<compile_context>
chip_gen: v7x
topology: tpu7x:2x2x1
jax: 0.10.0
libtpu: 0.0.40
codegen_flags: <defaults>
</compile_context>

<pallas_src>
import functools

import jax
import jax.numpy as jnp
from jax.experimental import pallas as pl
from jax.experimental.pallas import tpu as pltpu


def _mhsa_flash_kernel(
    q_ref, k_ref, v_ref, wm_ref, bm_ref,
    o_ref,
    m_scr, l_scr, acc_scr,
    *, num_heads, block_q, block_kv, causal,
):
    """One (batch, q-tile, kv-tile) grid step of flash multi-head attention.

    q_ref  : (1, H, tq, hd)  VMEM  pre-scaled query tile (resident across kv axis)
    k_ref  : (1, H, tk, hd)  VMEM  key tile
    v_ref  : (1, H, tk, hd)  VMEM  value tile
    wm_ref : (H, hd, hidden) VMEM  per-head slice of the mix weight
    bm_ref : (1, hidden)     VMEM  mix bias (f32)
    o_ref  : (1, tq, hidden)       output tile (resident across kv axis)
    m_scr/l_scr : (H, tq, 1) f32   online-softmax running max / denominator
    acc_scr     : (H, tq, hd) f32  attention output accumulator
    """
    q_idx = pl.program_id(1)
    kv_idx = pl.program_id(2)
    mm_dtype = q_ref.dtype          # bf16 by default (f32 path also supported)
    hidden = wm_ref.shape[-1]

    # ---- init: reset online-softmax state for this q tile ------------------
    @pl.when(kv_idx == 0)
    def _init():
        m_scr[...] = jnp.full_like(m_scr, -jnp.inf)
        l_scr[...] = jnp.zeros_like(l_scr)
        acc_scr[...] = jnp.zeros_like(acc_scr)

    # ---- per-kv-tile online-softmax update ---------------------------------
    def _attend(masked):
        q = q_ref[0]                                                 # (H, tq, hd)
        k = k_ref[0]                                                 # (H, tk, hd)
        v = v_ref[0]                                                 # (H, tk, hd)
        s = jnp.einsum("hqd,hkd->hqk", q, k,
                       preferred_element_type=jnp.float32)           # (H, tq, tk)
        if masked:
            # strict upper triangle (future positions) masked, as in the module
            row = q_idx * block_q + jax.lax.broadcasted_iota(
                jnp.int32, (block_q, block_kv), 0)
            col = kv_idx * block_kv + jax.lax.broadcasted_iota(
                jnp.int32, (block_q, block_kv), 1)
            s = jnp.where((col > row)[None, :, :], jnp.float32(-1e12), s)

        m_prev = m_scr[...]
        m_new = jnp.maximum(m_prev, jnp.max(s, axis=-1, keepdims=True))
        alpha = jnp.exp(m_prev - m_new)
        p = jnp.exp(s - m_new)
        l_scr[...] = alpha * l_scr[...] + jnp.sum(p, axis=-1, keepdims=True)
        acc_scr[...] = alpha * acc_scr[...] + jnp.einsum(
            "hqk,hkd->hqd", p.astype(mm_dtype), v,
            preferred_element_type=jnp.float32)
        m_scr[...] = m_new
        # TODO(synk): dropout on attention probs not implemented (module default
        # dropout=0 / eval-mode dropout is identity).

    if causal:
        # tile is processed at all iff its first column can be attended by the
        # last row of the q tile; it needs masking iff it crosses the diagonal.
        processed = kv_idx * block_kv < (q_idx + 1) * block_q
        needs_mask = (kv_idx + 1) * block_kv - 1 > q_idx * block_q

        @pl.when(jnp.logical_and(processed, jnp.logical_not(needs_mask)))
        def _():
            _attend(masked=False)

        @pl.when(jnp.logical_and(processed, needs_mask))
        def _():
            _attend(masked=True)
        # TODO(synk): causal-skipped kv tiles still pay the K/V DMA + grid-step
        # overhead; a scalar-prefetched per-q kv trip count would remove them.
    else:
        _attend(masked=False)

    # ---- finalize: normalize + fused per-head mix projection ----------------
    @pl.when(kv_idx == pl.num_programs(2) - 1)
    def _finalize():
        inv_l = 1.0 / l_scr[...]            # exact f32 divide, once per q tile
        out = jnp.zeros((block_q, hidden), jnp.float32)
        for h in range(num_heads):          # unrolled K-split MXU accumulation
            att_h = (acc_scr[h] * inv_l[h]).astype(mm_dtype)        # (tq, hd)
            out = out + jnp.dot(att_h, wm_ref[h],
                                preferred_element_type=jnp.float32)  # (tq, hidden)
        o_ref[0] = (out + bm_ref[...]).astype(o_ref.dtype)


def multi_head_self_attention(x, params, *, num_heads, causal=False,
                              block_q=128, block_kv=128,
                              mm_dtype=jnp.bfloat16,
                              vmem_limit_bytes=None):
    """x: (batch, seq, input_size) -> (batch, seq, hidden)."""
    bs, seq, input_size = x.shape
    hidden = params["wq"].shape[1]
    assert hidden % num_heads == 0
    H = num_heads
    hd = hidden // H
    scale_inv = 1.0 / (hd ** 0.5)

    tq = min(block_q, seq)
    tk = min(block_kv, seq)
    assert seq % tq == 0 and seq % tk == 0, "seq must be divisible by tile sizes"
    assert tq == seq or tq % 8 == 0
    # kv tile is the lane dim of the scores and the contraction dim of PV:
    assert tk == seq or tk % 128 == 0

    # ---- Q/K/V projections: lane-dense XLA GEMMs done once in the wrapper ----
    xm = x.astype(mm_dtype)

    def project(wn, bn):
        y = jnp.einsum("bsi,io->bso", xm, params[wn].astype(mm_dtype),
                       preferred_element_type=jnp.float32) + params[bn][0]
        return y.reshape(bs, seq, H, hd).transpose(0, 2, 1, 3)   # (bs, H, seq, hd)

    q = (project("wq", "bq") * scale_inv).astype(mm_dtype)   # pre-scale once
    k = project("wk", "bk").astype(mm_dtype)
    v = project("wv", "bv").astype(mm_dtype)

    # Per-head slices of the mix weight so the kernel can K-split accumulate
    # (no in-kernel concat/transpose of the attention tensor).
    wm = params["wmix"].reshape(H, hd, hidden).astype(mm_dtype)
    bm = params["bmix"].astype(jnp.float32)                  # (1, hidden)

    kernel = functools.partial(
        _mhsa_flash_kernel, num_heads=H, block_q=tq, block_kv=tk, causal=causal)

    grid = (bs, seq // tq, seq // tk)

    return pl.pallas_call(
        kernel,
        out_shape=jax.ShapeDtypeStruct((bs, seq, hidden), x.dtype),
        grid_spec=pltpu.PrefetchScalarGridSpec(
            num_scalar_prefetch=0,
            grid=grid,
            in_specs=[
                pl.BlockSpec((1, H, tq, hd), lambda b, i, j: (b, 0, i, 0)),  # Q tile
                pl.BlockSpec((1, H, tk, hd), lambda b, i, j: (b, 0, j, 0)),  # K tile
                pl.BlockSpec((1, H, tk, hd), lambda b, i, j: (b, 0, j, 0)),  # V tile
                # TODO(synk): wmix/bmix could be single-buffered
                # (pipeline_mode=pl.Buffered(1)) to shave VMEM further on v7x.
                pl.BlockSpec((H, hd, hidden), lambda b, i, j: (0, 0, 0)),    # wmix
                pl.BlockSpec((1, hidden), lambda b, i, j: (0, 0)),           # bmix
            ],
            out_specs=pl.BlockSpec((1, tq, hidden), lambda b, i, j: (b, i, 0)),
            scratch_shapes=[
                pltpu.VMEM((H, tq, 1), jnp.float32),   # running max
                pltpu.VMEM((H, tq, 1), jnp.float32),   # running denominator
                pltpu.VMEM((H, tq, hd), jnp.float32),  # attention accumulator
            ],
        ),
        compiler_params=pltpu.CompilerParams(
            dimension_semantics=("parallel", "parallel", "arbitrary"),
            vmem_limit_bytes=vmem_limit_bytes),
    )(q, k, v, wm, bm)


def init_params(key, input_size, hidden):
    """Deterministic synthetic parameters (shapes match the nn.Linear layers,
    stored transposed: W (in_features, out_features), y = x @ W + b)."""
    ks = jax.random.split(key, 8)

    def lin(kw, kb, fan_in, fan_out):
        w = jax.random.normal(kw, (fan_in, fan_out), jnp.float32) / jnp.sqrt(fan_in)
        b = jax.random.normal(kb, (1, fan_out), jnp.float32) * 0.02
        return w, b

    wq, bq = lin(ks[0], ks[1], input_size, hidden)
    wk, bk = lin(ks[2], ks[3], input_size, hidden)
    wv, bv = lin(ks[4], ks[5], input_size, hidden)
    wm, bm = lin(ks[6], ks[7], hidden, hidden)
    return dict(wq=wq, bq=bq, wk=wk, bk=bk, wv=wv, bv=bv, wmix=wm, bmix=bm)


def reference(x, params, *, num_heads, causal=False):
    """Pure-JAX f32 reference mirroring the PyTorch forward exactly."""
    bs, seq, _ = x.shape
    hidden = params["wq"].shape[1]
    hd = hidden // num_heads
    scale = hd ** 0.5

    def proj(w, b):
        y = x @ w + b[0]
        return y.reshape(bs, seq, num_heads, hd).transpose(0, 2, 1, 3)

    q = proj(params["wq"], params["bq"])
    k = proj(params["wk"], params["bk"])
    v = proj(params["wv"], params["bv"])
    scores = jnp.einsum("bhqd,bhkd->bhqk", q, k) / scale
    if causal:
        mask = jnp.arange(seq)[None, :] > jnp.arange(seq)[:, None]
        scores = jnp.where(mask, -1e12, scores)
    probs = jax.nn.softmax(scores, axis=-1)
    att = jnp.einsum("bhqk,bhkd->bhqd", probs, v)
    att = att.transpose(0, 2, 1, 3).reshape(bs, seq, hidden)
    return att @ params["wmix"] + params["bmix"][0]


if __name__ == "__main__":
    key = jax.random.PRNGKey(0)

    configs = [
        # (batch, seq, input_size, hidden, num_heads, block_q, block_kv)
        (2, 8, 16, 32, 4, 8, 8),        # single-tile path (blocks == seq)
        (2, 256, 32, 64, 4, 128, 128),  # multi-tile grid: online softmax +
                                        # tile-gated causal mask + tile skip
    ]

    for (batch, seq, input_size, hidden, num_heads, bq, bkv) in configs:
        key, kx, kp = jax.random.split(key, 3)
        x = jax.random.normal(kx, (batch, seq, input_size), jnp.float32)
        params = init_params(kp, input_size, hidden)

        for causal in (False, True):
            for mm_dtype, tol in ((jnp.float32, 2e-3), (jnp.bfloat16, 5e-2)):
                out = multi_head_self_attention(
                    x, params, num_heads=num_heads, causal=causal,
                    block_q=bq, block_kv=bkv, mm_dtype=mm_dtype)
                out = jax.block_until_ready(out)

                ref = reference(x, params, num_heads=num_heads, causal=causal)
                assert out.shape == (batch, seq, hidden)
                err = jnp.max(jnp.abs(out - ref))
                assert jnp.allclose(out, ref, atol=tol, rtol=tol), (
                    f"max err {err} (seq={seq}, causal={causal}, "
                    f"mm_dtype={mm_dtype})")

    # TODO(synk): return_attention=True path (full probability tensor) is not
    # produced by the flash-style kernel.
    print("KERNEL_OK")
</pallas_src>

<mosaic_0001>
module attributes {stable_mosaic.version = 11 : i64} {
  func.func @_mhsa_flash_kernel(%arg0: i32, %arg1: i32, %arg2: i32, %arg3: memref<1x4x8x8xf32, #tpu.memory_space<vmem>>, %arg4: memref<1x4x8x8xf32, #tpu.memory_space<vmem>>, %arg5: memref<1x4x8x8xf32, #tpu.memory_space<vmem>>, %arg6: memref<4x8x32xf32, #tpu.memory_space<vmem>>, %arg7: memref<1x32xf32, #tpu.memory_space<vmem>>, %arg8: memref<1x8x32xf32, #tpu.memory_space<vmem>>, %arg9: memref<4x8x1xf32, #tpu.memory_space<vmem>>, %arg10: memref<4x8x1xf32, #tpu.memory_space<vmem>>, %arg11: memref<4x8x8xf32, #tpu.memory_space<vmem>>) attributes {dimension_semantics = [#tpu.dimension_semantics<parallel>, #tpu.dimension_semantics<parallel>, #tpu.dimension_semantics<arbitrary>], iteration_bounds = array<i64: 2, 1, 1>, scalar_prefetch = 0 : i64, scratch_operands = 3 : i64, tpu.core_type = #tpu.core_type<tc>, window_params = [{transform_indices = @transform_0, window_bounds = array<i64: 1, 4, 8, 8>}, {transform_indices = @transform_1, window_bounds = array<i64: 1, 4, 8, 8>}, {transform_indices = @transform_2, window_bounds = array<i64: 1, 4, 8, 8>}, {pipeline_mode = #tpu.pipeline_mode<synchronous>, transform_indices = @transform_3, window_bounds = array<i64: 4, 8, 32>}, {pipeline_mode = #tpu.pipeline_mode<synchronous>, transform_indices = @transform_4, window_bounds = array<i64: 1, 32>}, {transform_indices = @transform_5, window_bounds = array<i64: 1, 8, 32>}]} {
    %c0_i32 = arith.constant 0 : i32
    %0 = arith.cmpi eq, %arg2, %c0_i32 : i32
    %1 = arith.extui %0 : i1 to i32
    %c0_i32_0 = arith.constant 0 : i32
    %2 = arith.cmpi ne, %1, %c0_i32_0 : i32
    scf.if %2 {
      %cst_35 = arith.constant 0xFF800000 : f32
      %35 = vector.broadcast %cst_35 : f32 to vector<4x8x1xf32>
      %c0_36 = arith.constant 0 : index
      %c0_37 = arith.constant 0 : index
      %c0_38 = arith.constant 0 : index
      %36 = vector.load %arg9[%c0_36, %c0_37, %c0_38] : memref<4x8x1xf32, #tpu.memory_space<vmem>>, vector<4x8x1xf32>
      tpu.vector_store %arg9[%c0_36, %c0_37, %c0_38], %35 {strides = array<i32>} : memref<4x8x1xf32, #tpu.memory_space<vmem>>, vector<4x8x1xf32>,
      %cst_39 = arith.constant 0.000000e+00 : f32
      %37 = vector.broadcast %cst_39 : f32 to vector<4x8x1xf32>
      %c0_40 = arith.constant 0 : index
      %c0_41 = arith.constant 0 : index
      %c0_42 = arith.constant 0 : index
      %38 = vector.load %arg10[%c0_40, %c0_41, %c0_42] : memref<4x8x1xf32, #tpu.memory_space<vmem>>, vector<4x8x1xf32>
      tpu.vector_store %arg10[%c0_40, %c0_41, %c0_42], %37 {strides = array<i32>} : memref<4x8x1xf32, #tpu.memory_space<vmem>>, vector<4x8x1xf32>,
      %cst_43 = arith.constant 0.000000e+00 : f32
      %39 = vector.broadcast %cst_43 : f32 to vector<4x8x8xf32>
      %c0_44 = arith.constant 0 : index
      %c0_45 = arith.constant 0 : index
      %c0_46 = arith.constant 0 : index
      %40 = vector.load %arg11[%c0_44, %c0_45, %c0_46] : memref<4x8x8xf32, #tpu.memory_space<vmem>>, vector<4x8x8xf32>
      tpu.vector_store %arg11[%c0_44, %c0_45, %c0_46], %39 {strides = array<i32>} : memref<4x8x8xf32, #tpu.memory_space<vmem>>, vector<4x8x8xf32>,
    } else {
    }
    %c0 = arith.constant 0 : index
    %c0_1 = arith.constant 0 : index
    %c0_2 = arith.constant 0 : index
    %c0_3 = arith.constant 0 : index
    %3 = vector.load %arg3[%c0, %c0_1, %c0_2, %c0_3] : memref<1x4x8x8xf32, #tpu.memory_space<vmem>>, vector<1x4x8x8xf32>
    %4 = vector.shape_cast %3 : vector<1x4x8x8xf32> to vector<4x8x8xf32>
    %c0_4 = arith.constant 0 : index
    %c0_5 = arith.constant 0 : index
    %c0_6 = arith.constant 0 : index
    %c0_7 = arith.constant 0 : index
    %5 = vector.load %arg4[%c0_4, %c0_5, %c0_6, %c0_7] : memref<1x4x8x8xf32, #tpu.memory_space<vmem>>, vector<1x4x8x8xf32>
    %6 = vector.shape_cast %5 : vector<1x4x8x8xf32> to vector<4x8x8xf32>
    %c0_8 = arith.constant 0 : index
    %c0_9 = arith.constant 0 : index
    %c0_10 = arith.constant 0 : index
    %c0_11 = arith.constant 0 : index
    %7 = vector.load %arg5[%c0_8, %c0_9, %c0_10, %c0_11] : memref<1x4x8x8xf32, #tpu.memory_space<vmem>>, vector<1x4x8x8xf32>
    %8 = vector.shape_cast %7 : vector<1x4x8x8xf32> to vector<4x8x8xf32>
    "tpu.trace_start"() <{level = 10 : i32, message = "hqd,hkd->hqk"}> : () -> ()
    %cst = arith.constant dense<0.000000e+00> : vector<4x8x8xf32>
    %9 = tpu.matmul %4, %6, %cst {dimension_numbers = #tpu.dot_dimension_numbers<[2], [2], [1], [1], [0, 0, 0, 1, 1, 1], [0], [0]>} : vector<4x8x8xf32>, vector<4x8x8xf32>, vector<4x8x8xf32> -> vector<4x8x8xf32>
    "tpu.trace_stop"() : () -> ()
    %c0_12 = arith.constant 0 : index
    %c0_13 = arith.constant 0 : index
    %c0_14 = arith.constant 0 : index
    %10 = vector.load %arg9[%c0_12, %c0_13, %c0_14] : memref<4x8x1xf32, #tpu.memory_space<vmem>>, vector<4x8x1xf32>
    %cst_15 = arith.constant dense<0xFF800000> : vector<4x8xf32>
    %11 = vector.multi_reduction <maximumf>, %9, %cst_15 [2] : vector<4x8x8xf32> to vector<4x8xf32>
    %12 = vector.shape_cast %11 : vector<4x8xf32> to vector<4x8x1xf32>
    %13 = arith.maximumf %10, %12 : vector<4x8x1xf32>
    %14 = arith.subf %10, %13 : vector<4x8x1xf32>
    %15 = math.exp %14 : vector<4x8x1xf32>
    %16 = vector.broadcast %13 : vector<4x8x1xf32> to vector<4x8x8xf32>
    %17 = arith.subf %9, %16 : vector<4x8x8xf32>
    %18 = math.exp %17 : vector<4x8x8xf32>
    %c0_16 = arith.constant 0 : index
    %c0_17 = arith.constant 0 : index
    %c0_18 = arith.constant 0 : index
    %19 = vector.load %arg10[%c0_16, %c0_17, %c0_18] : memref<4x8x1xf32, #tpu.memory_space<vmem>>, vector<4x8x1xf32>
    %20 = arith.mulf %15, %19 : vector<4x8x1xf32>
    %cst_19 = arith.constant dense<0.000000e+00> : vector<4x8xf32>
    %21 = vector.multi_reduction <add>, %18, %cst_19 [2] : vector<4x8x8xf32> to vector<4x8xf32>
    %22 = vector.shape_cast %21 : vector<4x8xf32> to vector<4x8x1xf32>
    %23 = arith.addf %20, %22 : vector<4x8x1xf32>
    %c0_20 = arith.constant 0 : index
    %c0_21 = arith.constant 0 : index
    %c0_22 = arith.constant 0 : index
    %24 = vector.load %arg10[%c0_20, %c0_21, %c0_22] : memref<4x8x1xf32, #tpu.memory_space<vmem>>, vector<4x8x1xf32>
    tpu.vector_store %arg10[%c0_20, %c0_21, %c0_22], %23 {strides = array<i32>} : memref<4x8x1xf32, #tpu.memory_space<vmem>>, vector<4x8x1xf32>,
    %c0_23 = arith.constant 0 : index
    %c0_24 = arith.constant 0 : index
    %c0_25 = arith.constant 0 : index
    %25 = vector.load %arg11[%c0_23, %c0_24, %c0_25] : memref<4x8x8xf32, #tpu.memory_space<vmem>>, vector<4x8x8xf32>
    %26 = vector.broadcast %15 : vector<4x8x1xf32> to vector<4x8x8xf32>
    %27 = arith.mulf %26, %25 : vector<4x8x8xf32>
    "tpu.trace_start"() <{level = 10 : i32, message = "hqk,hkd->hqd"}> : () -> ()
    %cst_26 = arith.constant dense<0.000000e+00> : vector<4x8x8xf32>
    %28 = tpu.matmul %18, %8, %cst_26 {dimension_numbers = #tpu.dot_dimension_numbers<[2], [1], [1], [2], [0, 0, 0, 1, 1, 2], [0], [0]>} : vector<4x8x8xf32>, vector<4x8x8xf32>, vector<4x8x8xf32> -> vector<4x8x8xf32>
    "tpu.trace_stop"() : () -> ()
    %29 = arith.addf %27, %28 : vector<4x8x8xf32>
    %c0_27 = arith.constant 0 : index
    %c0_28 = arith.constant 0 : index
    %c0_29 = arith.constant 0 : index
    %30 = vector.load %arg11[%c0_27, %c0_28, %c0_29] : memref<4x8x8xf32, #tpu.memory_space<vmem>>, vector<4x8x8xf32>
    tpu.vector_store %arg11[%c0_27, %c0_28, %c0_29], %29 {strides = array<i32>} : memref<4x8x8xf32, #tpu.memory_space<vmem>>, vector<4x8x8xf32>,
    %c0_30 = arith.constant 0 : index
    %c0_31 = arith.constant 0 : index
    %c0_32 = arith.constant 0 : index
    %31 = vector.load %arg9[%c0_30, %c0_31, %c0_32] : memref<4x8x1xf32, #tpu.memory_space<vmem>>, vector<4x8x1xf32>
    tpu.vector_store %arg9[%c0_30, %c0_31, %c0_32], %13 {strides = array<i32>} : memref<4x8x1xf32, #tpu.memory_space<vmem>>, vector<4x8x1xf32>,
    %c0_i32_33 = arith.constant 0 : i32
    %32 = arith.cmpi eq, %arg2, %c0_i32_33 : i32
    %33 = arith.extui %32 : i1 to i32
    %c0_i32_34 = arith.constant 0 : i32
    %34 = arith.cmpi ne, %33, %c0_i32_34 : i32
    scf.if %34 {
      %c0_35 = arith.constant 0 : index
      %c0_36 = arith.constant 0 : index
      %c0_37 = arith.constant 0 : index
      %35 = vector.load %arg10[%c0_35, %c0_36, %c0_37] : memref<4x8x1xf32, #tpu.memory_space<vmem>>, vector<4x8x1xf32>
      %cst_38 = arith.constant 1.000000e+00 : f32
      %36 = vector.broadcast %cst_38 : f32 to vector<4x8x1xf32>
      %37 = arith.divf %36, %35 : vector<4x8x1xf32>
      %cst_39 = arith.constant 0.000000e+00 : f32
      %38 = vector.broadcast %cst_39 : f32 to vector<8x32xf32>
      %c0_40 = arith.constant 0 : index
      %c0_41 = arith.constant 0 : index
      %c0_42 = arith.constant 0 : index
      %39 = vector.load %arg11[%c0_40, %c0_41, %c0_42] : memref<4x8x8xf32, #tpu.memory_space<vmem>>, vector<1x8x8xf32>
      %40 = vector.shape_cast %39 : vector<1x8x8xf32> to vector<8x8xf32>
      %41 = vector.extract_strided_slice %37 {offsets = [0, 0, 0], sizes = [1, 8, 1], strides = [1, 1, 1]} : vector<4x8x1xf32> to vector<1x8x1xf32>
      %42 = vector.shape_cast %41 : vector<1x8x1xf32> to vector<8x1xf32>
      %43 = vector.broadcast %42 : vector<8x1xf32> to vector<8x8xf32>
      %44 = arith.mulf %40, %43 : vector<8x8xf32>
      %c0_43 = arith.constant 0 : index
      %c0_44 = arith.constant 0 : index
      %c0_45 = arith.constant 0 : index
      %45 = vector.load %arg6[%c0_43, %c0_44, %c0_45] : memref<4x8x32xf32, #tpu.memory_space<vmem>>, vector<1x8x32xf32>
      %46 = vector.shape_cast %45 : vector<1x8x32xf32> to vector<8x32xf32>
      %cst_46 = arith.constant dense<0.000000e+00> : vector<8x32xf32>
      %47 = tpu.matmul %44, %46, %cst_46 {dimension_numbers = #tpu.dot_dimension_numbers<[1], [0], [0], [1], [0, 0, 1, 1], [], []>} : vector<8x8xf32>, vector<8x32xf32>, vector<8x32xf32> -> vector<8x32xf32>
      %48 = arith.addf %38, %47 : vector<8x32xf32>
      %c1 = arith.constant 1 : index
      %c0_47 = arith.constant 0 : index
      %c0_48 = arith.constant 0 : index
      %49 = vector.load %arg11[%c1, %c0_47, %c0_48] : memref<4x8x8xf32, #tpu.memory_space<vmem>>, vector<1x8x8xf32>
      %50 = vector.shape_cast %49 : vector<1x8x8xf32> to vector<8x8xf32>
      %51 = vector.extract_strided_slice %37 {offsets = [1, 0, 0], sizes = [1, 8, 1], strides = [1, 1, 1]} : vector<4x8x1xf32> to vector<1x8x1xf32>
      %52 = vector.shape_cast %51 : vector<1x8x1xf32> to vector<8x1xf32>
      %53 = vector.broadcast %52 : vector<8x1xf32> to vector<8x8xf32>
      %54 = arith.mulf %50, %53 : vector<8x8xf32>
      %c1_49 = arith.constant 1 : index
      %c0_50 = arith.constant 0 : index
      %c0_51 = arith.constant 0 : index
      %55 = vector.load %arg6[%c1_49, %c0_50, %c0_51] : memref<4x8x32xf32, #tpu.memory_space<vmem>>, vector<1x8x32xf32>
      %56 = vector.shape_cast %55 : vector<1x8x32xf32> to vector<8x32xf32>
      %cst_52 = arith.constant dense<0.000000e+00> : vector<8x32xf32>
      %57 = tpu.matmul %54, %56, %cst_52 {dimension_numbers = #tpu.dot_dimension_numbers<[1], [0], [0], [1], [0, 0, 1, 1], [], []>} : vector<8x8xf32>, vector<8x32xf32>, vector<8x32xf32> -> vector<8x32xf32>
      %58 = arith.addf %48, %57 : vector<8x32xf32>
      %c2 = arith.constant 2 : index
      %c0_53 = arith.constant 0 : index
      %c0_54 = arith.constant 0 : index
      %59 = vector.load %arg11[%c2, %c0_53, %c0_54] : memref<4x8x8xf32, #tpu.memory_space<vmem>>, vector<1x8x8xf32>
      %60 = vector.shape_cast %59 : vector<1x8x8xf32> to vector<8x8xf32>
      %61 = vector.extract_strided_slice %37 {offsets = [2, 0, 0], sizes = [1, 8, 1], strides = [1, 1, 1]} : vector<4x8x1xf32> to vector<1x8x1xf32>
      %62 = vector.shape_cast %61 : vector<1x8x1xf32> to vector<8x1xf32>
      %63 = vector.broadcast %62 : vector<8x1xf32> to vector<8x8xf32>
      %64 = arith.mulf %60, %63 : vector<8x8xf32>
      %c2_55 = arith.constant 2 : index
      %c0_56 = arith.constant 0 : index
      %c0_57 = arith.constant 0 : index
      %65 = vector.load %arg6[%c2_55, %c0_56, %c0_57] : memref<4x8x32xf32, #tpu.memory_space<vmem>>, vector<1x8x32xf32>
      %66 = vector.shape_cast %65 : vector<1x8x32xf32> to vector<8x32xf32>
      %cst_58 = arith.constant dense<0.000000e+00> : vector<8x32xf32>
      %67 = tpu.matmul %64, %66, %cst_58 {dimension_numbers = #tpu.dot_dimension_numbers<[1], [0], [0], [1], [0, 0, 1, 1], [], []>} : vector<8x8xf32>, vector<8x32xf32>, vector<8x32xf32> -> vector<8x32xf32>
      %68 = arith.addf %58, %67 : vector<8x32xf32>
      %c3 = arith.constant 3 : index
      %c0_59 = arith.constant 0 : index
      %c0_60 = arith.constant 0 : index
      %69 = vector.load %arg11[%c3, %c0_59, %c0_60] : memref<4x8x8xf32, #tpu.memory_space<vmem>>, vector<1x8x8xf32>
      %70 = vector.shape_cast %69 : vector<1x8x8xf32> to vector<8x8xf32>
      %71 = vector.extract_strided_slice %37 {offsets = [3, 0, 0], sizes = [1, 8, 1], strides = [1, 1, 1]} : vector<4x8x1xf32> to vector<1x8x1xf32>
      %72 = vector.shape_cast %71 : vector<1x8x1xf32> to vector<8x1xf32>
      %73 = vector.broadcast %72 : vector<8x1xf32> to vector<8x8xf32>
      %74 = arith.mulf %70, %73 : vector<8x8xf32>
      %c3_61 = arith.constant 3 : index
      %c0_62 = arith.constant 0 : index
      %c0_63 = arith.constant 0 : index
      %75 = vector.load %arg6[%c3_61, %c0_62, %c0_63] : memref<4x8x32xf32, #tpu.memory_space<vmem>>, vector<1x8x32xf32>
      %76 = vector.shape_cast %75 : vector<1x8x32xf32> to vector<8x32xf32>
      %cst_64 = arith.constant dense<0.000000e+00> : vector<8x32xf32>
      %77 = tpu.matmul %74, %76, %cst_64 {dimension_numbers = #tpu.dot_dimension_numbers<[1], [0], [0], [1], [0, 0, 1, 1], [], []>} : vector<8x8xf32>, vector<8x32xf32>, vector<8x32xf32> -> vector<8x32xf32>
      %78 = arith.addf %68, %77 : vector<8x32xf32>
      %c0_65 = arith.constant 0 : index
      %c0_66 = arith.constant 0 : index
      %79 = vector.load %arg7[%c0_65, %c0_66] : memref<1x32xf32, #tpu.memory_space<vmem>>, vector<1x32xf32>
      %80 = vector.broadcast %79 : vector<1x32xf32> to vector<8x32xf32>
      %81 = arith.addf %78, %80 : vector<8x32xf32>
      %c0_67 = arith.constant 0 : index
      %c0_68 = arith.constant 0 : index
      %c0_69 = arith.constant 0 : index
      %82 = vector.load %arg8[%c0_67, %c0_68, %c0_69] : memref<1x8x32xf32, #tpu.memory_space<vmem>>, vector<1x8x32xf32>
      %83 = vector.shape_cast %82 : vector<1x8x32xf32> to vector<8x32xf32>
      %84 = vector.shape_cast %81 : vector<8x32xf32> to vector<1x8x32xf32>
      tpu.vector_store %arg8[%c0_67, %c0_68, %c0_69], %84 {strides = array<i32>} : memref<1x8x32xf32, #tpu.memory_space<vmem>>, vector<1x8x32xf32>,
    } else {
    }
    return
  }
  func.func @transform_0(%arg0: i32, %arg1: i32, %arg2: i32) -> (i32, i32, i32, i32) {
    %c0_i32 = arith.constant 0 : i32
    %c0_i32_0 = arith.constant 0 : i32
    %c0_i32_1 = arith.constant 0 : i32
    return %arg0, %c0_i32, %arg1, %c0_i32_0 : i32, i32, i32, i32
  }
  func.func @transform_1(%arg0: i32, %arg1: i32, %arg2: i32) -> (i32, i32, i32, i32) {
    %c0_i32 = arith.constant 0 : i32
    %c0_i32_0 = arith.constant 0 : i32
    %c0_i32_1 = arith.constant 0 : i32
    return %arg0, %c0_i32, %arg2, %c0_i32_0 : i32, i32, i32, i32
  }
  func.func @transform_2(%arg0: i32, %arg1: i32, %arg2: i32) -> (i32, i32, i32, i32) {
    %c0_i32 = arith.constant 0 : i32
    %c0_i32_0 = arith.constant 0 : i32
    %c0_i32_1 = arith.constant 0 : i32
    return %arg0, %c0_i32, %arg2, %c0_i32_0 : i32, i32, i32, i32
  }
  func.func @transform_3(%arg0: i32, %arg1: i32, %arg2: i32) -> (i32, i32, i32) {
    %c0_i32 = arith.constant 0 : i32
    %c0_i32_0 = arith.constant 0 : i32
    %c0_i32_1 = arith.constant 0 : i32
    %c0_i32_2 = arith.constant 0 : i32
    return %c0_i32, %c0_i32_0, %c0_i32_1 : i32, i32, i32
  }
  func.func @transform_4(%arg0: i32, %arg1: i32, %arg2: i32) -> (i32, i32) {
    %c0_i32 = arith.constant 0 : i32
    %c0_i32_0 = arith.constant 0 : i32
    %c0_i32_1 = arith.constant 0 : i32
    return %c0_i32, %c0_i32_0 : i32, i32
  }
  func.func @transform_5(%arg0: i32, %arg1: i32, %arg2: i32) -> (i32, i32, i32) {
    %c0_i32 = arith.constant 0 : i32
    %c0_i32_0 = arith.constant 0 : i32
    return %arg0, %arg1, %c0_i32 : i32, i32, i32
  }
}

</mosaic_0001>

<llo_original>
// kernel: tpu_custom_call.1
$region0: #{tpu_custom_call.1}
  #allocation0 [shape = 'u32[]', space=smem, size = 0x4, offset = 0x4, fixed_abs, tag = 'smem constant byte address 0x4 - core index']
  #allocation1 [shape = 'u32[144,128]{1,0:T(1,128)}', space=vmem, size = 0x12000, scoped, tag = 'internal scratch']
  #allocation2 [shape = 'f32[4,8,1]{2,1,0:T(8,128)}', space=vmem, size = 0x4000, scoped, tag = 'scratch operand']
  #allocation3 [shape = 'f32[4,8,1]{2,1,0:T(8,128)}', space=vmem, size = 0x4000, scoped, tag = 'scratch operand']
  #allocation4 [shape = 'f32[4,8,8]{2,1,0:T(8,128)}', space=vmem, size = 0x4000, scoped, tag = 'scratch operand']
  %s0 = inlined_call_operand.hbm [shape: f32[2,4,8,8], index: 0, kind: input, shape index: {}]
  %s1 = inlined_call_operand.hbm [shape: f32[2,4,8,8], index: 1, kind: input, shape index: {}]
  %s2 = inlined_call_operand.hbm [shape: f32[2,4,8,8], index: 2, kind: input, shape index: {}]
  %s3 = inlined_call_operand.hbm [shape: f32[4,8,32], index: 3, kind: input, shape index: {}]
  %s4 = inlined_call_operand.vmem [shape: f32[1,32], index: 4, kind: input, shape index: {}]
  %s5 = inlined_call_operand.hbm [shape: f32[2,8,32], index: 5, kind: output, shape index: {}]
  %s6 = sld [smem:[#allocation0]]
  $region77: #{tpu_custom_call.1} parent=0
    _
  %s8 = ssub.s32 1, %s6
  %s9 = scalar_select 0, %s8, %s6
  $region1: #{tpu_custom_call.1} parent=0
    #allocation5 [shape = 'u8[32768]{0}', space=vmem, size = 0x8000, scoped, tag = 'input window, operand 0']
    #allocation6 [shape = 's32[2]{0}', space=sflag, size = 0x8, scoped, tag = 'scoped memory for tpu_custom_call.1']
    #allocation7 [shape = 's32[2]{0}', space=sflag, size = 0x8, scoped, tag = 'scoped memory for tpu_custom_call.1']
    #allocation8 [shape = 'u8[32768]{0}', space=vmem, size = 0x8000, scoped, tag = 'input window, operand 1']
    #allocation9 [shape = 's32[2]{0}', space=sflag, size = 0x8, scoped, tag = 'scoped memory for tpu_custom_call.1']
    #allocation10 [shape = 'u8[32768]{0}', space=vmem, size = 0x8000, scoped, tag = 'input window, operand 2']
    #allocation11 [shape = 'u8[16384]{0}', space=vmem, size = 0x4000, scoped, tag = 'input window, operand 3, single buffered']
    #allocation12 [shape = 's32[1]{0}', space=sflag, size = 0x4, scoped, tag = 'scoped memory for tpu_custom_call.1']
    #allocation13 [shape = 'u8[8192]{0}', space=vmem, size = 0x2000, scoped, tag = 'output window, operand 0']
    %10 = vsyncpa [#allocation6], 0
    %s11 = scalar_lea.sflag [#allocation6], 1
    %12 = vsyncpa %s11, 0
    %13 = vsyncpa [#allocation9], 0
    %s14 = scalar_lea.sflag [#allocation9], 1
    %15 = vsyncpa %s14, 0
    %16 = vsyncpa [#allocation12], 0
    %17 = vsyncpa [#allocation7], 0
    %s18 = scalar_lea.sflag [#allocation7], 1
    %19 = vsyncpa %s18, 0
    loop: start=0, step=1, limit=4
    $region2: #{tpu_custom_call.1} parent=1 // loop_pre_header
      _
    $region3: #{tpu_custom_call.1} parent=1 // loop_header
      %s21 = sphi 0, %s25
      %p22 = scmp.ge.s32.totalorder %s21, 4
      %s28 = sphi 0, %s47
      %s29 = sphi 0, %s43
      %s30 = sphi 0, %s39
      %s31 = sphi 0, %s28
      %s32 = sphi 0, %s29
      %s33 = sphi 0, %s30
      %s34 = sphi 0, %s31
      %s35 = sphi 0, %s32
      %s36 = sphi 0, %s33
      %s52 = sphi 0, %s54
      %s55 = sphi 0, %s52
      %s56 = sphi 0, %s55
      %s72 = sphi 0, %s56
      %s80 = sphi 0, %s82
      %s83 = sphi 0, %s80
      %s84 = sphi 0, %s83
      %s100 = sphi 0, %s84
      %s108 = sphi 0, %s110
      %s111 = sphi 0, %s108
      %s112 = sphi 0, %s111
      %s128 = sphi 0, %s112
      %s132 = sphi 0, %s132
      %s134 = sphi 0, %s132
      %s135 = sphi 0, %s134
      %s149 = sphi 0, %s135
      %s153 = sphi 0, %s153
      %s155 = sphi 0, %s153
      %s156 = sphi 0, %s155
      %s170 = sphi 0, %s156
      %s178 = sphi 0, %s180
      %s181 = sphi 0, %s178
      %s182 = sphi 0, %s181
      %s198 = sphi 0, %s182
    $region4: #{tpu_custom_call.1} parent=1 // loop_header_branch
      %24 = sbr.rel (%p22) target = $region8
    $region5: #{tpu_custom_call.1} parent=1 // loop_body
      %s26 = ssub.s32 %s21, 1
      %s27 = ssub.s32 %s21, 2
      %s37 = sadd.s32 1, %s30
      %p38 = scmp.ge.s32.totalorder %s37, 1
      %s39 = scalar_select %p38, 0, %s37
      %s40 = sadd.s32 1, %s29
      %s41 = scalar_select %p38, %s40, %s29
      %p42 = scmp.ge.s32.totalorder %s41, 1
      %s43 = scalar_select %p42, 0, %s41
      %s44 = sadd.s32 1, %s28
      %s45 = scalar_select %p42, %s44, %s28
      %p46 = scmp.ge.s32.totalorder %s45, 2
      %s47 = scalar_select %p46, 0, %s45
      %s48 = ssub.s32 %s28, %s47
      %s49 = ssub.s32 %s29, %s43
      %s50 = sor.u32 %s48, %s49
      %p51 = scmp.eq.s32.totalorder %s50, 0
      %s53 = sadd.s32 %s52, 1
      %s54 = scalar_select %p51, %s52, %s53
      %p57 = pneg %p51
      %p58 = scmp.eq.s32.totalorder %s21, 1
      %p59 = por %p57, %p58
      %p60 = scmp.ne.s32.totalorder %s52, %s55
      %p61 = scmp.eq.s32.totalorder %s21, 0
      %p62 = por %p60, %p61
      %p63 = scmp.ne.s32.totalorder %s52, %s55
      %p64 = scmp.eq.s32.totalorder %s26, 1
      %p65 = por %p63, %p64
      %p66 = scmp.ne.s32.totalorder %s55, %s56
      %p67 = scmp.eq.s32.totalorder %s26, 0
      %p68 = por %p66, %p67
      %p69 = scmp.ne.s32.totalorder %s55, %s56
      %p70 = scmp.eq.s32.totalorder %s27, 1
      %p71 = por %p69, %p70
      %p73 = scmp.ne.s32.totalorder %s56, %s72
      %p74 = scmp.eq.s32.totalorder %s27, 0
      %p75 = por %p73, %p74
      %s76 = ssub.s32 %s28, %s47
      %s77 = ssub.s32 %s30, %s39
      %s78 = sor.u32 %s76, %s77
      %p79 = scmp.eq.s32.totalorder %s78, 0
      %s81 = sadd.s32 %s80, 1
      %s82 = scalar_select %p79, %s80, %s81
      %p85 = pneg %p79
      %p86 = scmp.eq.s32.totalorder %s21, 1
      %p87 = por %p85, %p86
      %p88 = scmp.ne.s32.totalorder %s80, %s83
      %p89 = scmp.eq.s32.totalorder %s21, 0
      %p90 = por %p88, %p89
      %p91 = scmp.ne.s32.totalorder %s80, %s83
      %p92 = scmp.eq.s32.totalorder %s26, 1
      %p93 = por %p91, %p92
      %p94 = scmp.ne.s32.totalorder %s83, %s84
      %p95 = scmp.eq.s32.totalorder %s26, 0
      %p96 = por %p94, %p95
      %p97 = scmp.ne.s32.totalorder %s83, %s84
      %p98 = scmp.eq.s32.totalorder %s27, 1
      %p99 = por %p97, %p98
      %p101 = scmp.ne.s32.totalorder %s84, %s100
      %p102 = scmp.eq.s32.totalorder %s27, 0
      %p103 = por %p101, %p102
      %s104 = ssub.s32 %s28, %s47
      %s105 = ssub.s32 %s30, %s39
      %s106 = sor.u32 %s104, %s105
      %p107 = scmp.eq.s32.totalorder %s106, 0
      %s109 = sadd.s32 %s108, 1
      %s110 = scalar_select %p107, %s108, %s109
      %p113 = pneg %p107
      %p114 = scmp.eq.s32.totalorder %s21, 1
      %p115 = por %p113, %p114
      %p116 = scmp.ne.s32.totalorder %s108, %s111
      %p117 = scmp.eq.s32.totalorder %s21, 0
      %p118 = por %p116, %p117
      %p119 = scmp.ne.s32.totalorder %s108, %s111
      %p120 = scmp.eq.s32.totalorder %s26, 1
      %p121 = por %p119, %p120
      %p122 = scmp.ne.s32.totalorder %s111, %s112
      %p123 = scmp.eq.s32.totalorder %s26, 0
      %p124 = por %p122, %p123
      %p125 = scmp.ne.s32.totalorder %s111, %s112
      %p126 = scmp.eq.s32.totalorder %s27, 1
      %p127 = por %p125, %p126
      %p129 = scmp.ne.s32.totalorder %s112, %s128
      %p130 = scmp.eq.s32.totalorder %s27, 0
      %p131 = por %p129, %p130
      %s133 = sadd.s32 %s132, 1
      %p136 = scmp.eq.s32.totalorder %s21, 1
      %p137 = scmp.ne.s32.totalorder %s132, %s134
      %p138 = scmp.eq.s32.totalorder %s21, 0
      %p139 = por %p137, %p138
      %p140 = scmp.ne.s32.totalorder %s132, %s134
      %p141 = scmp.eq.s32.totalorder %s26, 1
      %p142 = por %p140, %p141
      %p143 = scmp.ne.s32.totalorder %s134, %s135
      %p144 = scmp.eq.s32.totalorder %s26, 0
      %p145 = por %p143, %p144
      %p146 = scmp.ne.s32.totalorder %s134, %s135
      %p147 = scmp.eq.s32.totalorder %s27, 1
      %p148 = por %p146, %p147
      %p150 = scmp.ne.s32.totalorder %s135, %s149
      %p151 = scmp.eq.s32.totalorder %s27, 0
      %p152 = por %p150, %p151
      %s154 = sadd.s32 %s153, 1
      %p157 = scmp.eq.s32.totalorder %s21, 1
      %p158 = scmp.ne.s32.totalorder %s153, %s155
      %p159 = scmp.eq.s32.totalorder %s21, 0
      %p160 = por %p158, %p159
      %p161 = scmp.ne.s32.totalorder %s153, %s155
      %p162 = scmp.eq.s32.totalorder %s26, 1
      %p163 = por %p161, %p162
      %p164 = scmp.ne.s32.totalorder %s155, %s156
      %p165 = scmp.eq.s32.totalorder %s26, 0
      %p166 = por %p164, %p165
      %p167 = scmp.ne.s32.totalorder %s155, %s156
      %p168 = scmp.eq.s32.totalorder %s27, 1
      %p169 = por %p167, %p168
      %p171 = scmp.ne.s32.totalorder %s156, %s170
      %p172 = scmp.eq.s32.totalorder %s27, 0
      %p173 = por %p171, %p172
      %s174 = ssub.s32 %s28, %s47
      %s175 = ssub.s32 %s29, %s43
      %s176 = sor.u32 %s174, %s175
      %p177 = scmp.eq.s32.totalorder %s176, 0
      %s179 = sadd.s32 %s178, 1
      %s180 = scalar_select %p177, %s178, %s179
      %p183 = pneg %p177
      %p184 = scmp.eq.s32.totalorder %s21, 1
      %p185 = por %p183, %p184
      %p186 = scmp.ne.s32.totalorder %s178, %s181
      %p187 = scmp.eq.s32.totalorder %s21, 0
      %p188 = por %p186, %p187
      %p189 = scmp.ne.s32.totalorder %s178, %s181
      %p190 = scmp.eq.s32.totalorder %s26, 1
      %p191 = por %p189, %p190
      %p192 = scmp.ne.s32.totalorder %s181, %s182
      %p193 = scmp.eq.s32.totalorder %s26, 0
      %p194 = por %p192, %p193
      %p195 = scmp.ne.s32.totalorder %s181, %s182
      %p196 = scmp.eq.s32.totalorder %s27, 1
      %p197 = por %p195, %p196
      %p199 = scmp.ne.s32.totalorder %s182, %s198
      %p200 = scmp.eq.s32.totalorder %s27, 0
      %p201 = por %p199, %p200
      %p202 = scmp.le.s32.totalorder 1, %s21
      %p203 = scmp.lt.s32.totalorder %s21, 3
      %p204 = pnand %p202, %p203
      %p205 = pneg %p204
      // Predicated region
      $region9: #{tpu_custom_call.1} parent=5 // pred_check
        _
      $region10: #{tpu_custom_call.1} parent=5 // pred_check_branch
        %207 = sbr.rel (%p204) target = $region12
      $region11: #{tpu_custom_call.1} parent=5 // pred_region
        %s208 = ssub.s32 %s21, 1
        // Predicated region
        $region13: #{tpu_custom_call.1} parent=11 // pred_check
          %p209 = pneg %p145
        $region14: #{tpu_custom_call.1} parent=11 // pred_check_branch
          %211 = sbr.rel (%p209) target = $region16
        $region15: #{tpu_custom_call.1} parent=11 // pred_region
          %s213 = ssub.s32 512, 512
          %214 = vsyncadd [#allocation12], %s213
          %s215 = sshll.u32 [#allocation11], 4
          %s216 = int_to_ptr.vmem [resolvable:$true] %s215
          %221 = dma.hbm_to_vmem [thread:$0]  %s3, 512, %s216, [#allocation12], 128, 128, 8
        $region16: #{tpu_custom_call.1} parent=11 // pred_fallthru
          _
        // Predicated region
        $region17: #{tpu_custom_call.1} parent=11 // pred_check
          %p222 = pneg %p166
        $region18: #{tpu_custom_call.1} parent=11 // pred_check_branch
          %224 = sbr.rel (%p222) target = $region20
        $region19: #{tpu_custom_call.1} parent=11 // pred_region
          _
        $region20: #{tpu_custom_call.1} parent=11 // pred_fallthru
          _
      $region12: #{tpu_custom_call.1} parent=5 // pred_fallthru
        _
      %p225 = scmp.lt.s32.totalorder %s21, 2
      // Predicated region
      $region21: #{tpu_custom_call.1} parent=5 // pred_check
        %p226 = pneg %p225
      $region22: #{tpu_custom_call.1} parent=5 // pred_check_branch
        %228 = sbr.rel (%p226) target = $region24
      $region23: #{tpu_custom_call.1} parent=5 // pred_region
        // Predicated region
        $region25: #{tpu_custom_call.1} parent=23 // pred_check
          %p229 = pneg %p62
        $region26: #{tpu_custom_call.1} parent=23 // pred_check_branch
          %231 = sbr.rel (%p229) target = $region28
        $region27: #{tpu_custom_call.1} parent=23 // pred_region
          %s232 = sand.u32 %s52, 1
          %s233 = scalar_lea.sflag [#allocation6], %s232
          %s234 = sand.u32 %s52, 1
          %s235 = smul.addr %s234, 32
          %s236 = scalar_lea.vmem [#allocation5], %s235
          %s238 = ssub.s32 512, 512
          %239 = vsyncadd %s233, %s238
          %s240 = smul.addr %s28, 4
          %s241 = sadd.s32 %s29, %s240
          %s242 = smul.addr %s241, 128
          %s243 = scalar_lea.hbm %s0, %s242
          %s244 = sshll.u32 %s236, 4
          %s245 = int_to_ptr.vmem [resolvable:$true] %s244
          %250 = dma.hbm_to_vmem [thread:$0]  %s243, 512, %s245, %s233, 128, 128, 8
        $region28: #{tpu_custom_call.1} parent=23 // pred_fallthru
          _
        // Predicated region
        $region29: #{tpu_custom_call.1} parent=23 // pred_check
          %p251 = pneg %p90
        $region30: #{tpu_custom_call.1} parent=23 // pred_check_branch
          %253 = sbr.rel (%p251) target = $region32
        $region31: #{tpu_custom_call.1} parent=23 // pred_region
          %s254 = sand.u32 %s21, 1
          %s255 = scalar_lea.sflag [#allocation9], %s254
          %s256 = sand.u32 %s80, 1
          %s257 = smul.addr %s256, 32
          %s258 = scalar_lea.vmem [#allocation8], %s257
          %s260 = ssub.s32 512, 512
          %261 = vsyncadd %s255, %s260
          %s262 = smul.addr %s28, 4
          %s263 = sadd.s32 %s30, %s262
          %s264 = smul.addr %s263, 128
          %s265 = scalar_lea.hbm %s1, %s264
          %s266 = sshll.u32 %s258, 4
          %s267 = int_to_ptr.vmem [resolvable:$true] %s266
          %272 = dma.hbm_to_vmem [thread:$0]  %s265, 512, %s267, %s255, 128, 128, 8
        $region32: #{tpu_custom_call.1} parent=23 // pred_fallthru
          _
        // Predicated region
        $region33: #{tpu_custom_call.1} parent=23 // pred_check
          %p273 = pneg %p118
        $region34: #{tpu_custom_call.1} parent=23 // pred_check_branch
          %275 = sbr.rel (%p273) target = $region36
        $region35: #{tpu_custom_call.1} parent=23 // pred_region
          %s276 = sand.u32 %s21, 1
          %s277 = scalar_lea.sflag [#allocation9], %s276
          %s278 = sand.u32 %s108, 1
          %s279 = smul.addr %s278, 32
          %s280 = scalar_lea.vmem [#allocation10], %s279
          %s282 = ssub.s32 512, 512
          %283 = vsyncadd %s277, %s282
          %s284 = smul.addr %s28, 4
          %s285 = sadd.s32 %s30, %s284
          %s286 = smul.addr %s285, 128
          %s287 = scalar_lea.hbm %s2, %s286
          %s288 = sshll.u32 %s280, 4
          %s289 = int_to_ptr.vmem [resolvable:$true] %s288
          %294 = dma.hbm_to_vmem [thread:$0]  %s287, 512, %s289, %s277, 128, 128, 8
        $region36: #{tpu_custom_call.1} parent=23 // pred_fallthru
          _
      $region24: #{tpu_custom_call.1} parent=5 // pred_fallthru
        _
      %p295 = scmp.le.s32.totalorder 1, %s21
      %p296 = scmp.lt.s32.totalorder %s21, 3
      %p297 = pnand %p295, %p296
      %p298 = pneg %p297
      // Predicated region
      $region37: #{tpu_custom_call.1} parent=5 // pred_check
        _
      $region38: #{tpu_custom_call.1} parent=5 // pred_check_branch
        %300 = sbr.rel (%p297) target = $region40
      $region39: #{tpu_custom_call.1} parent=5 // pred_region
        %s301 = ssub.s32 %s21, 1
        %s302 = sand.u32 %s55, 1
        %s303 = scalar_lea.sflag [#allocation6], %s302
        %s304 = sand.u32 %s55, 1
        %s305 = smul.addr %s304, 32
        %s306 = scalar_lea.vmem [#allocation5], %s305
        // Predicated region
        $region41: #{tpu_custom_call.1} parent=39 // pred_check
          %p307 = pneg %p68
        $region42: #{tpu_custom_call.1} parent=39 // pred_check_branch
          %309 = sbr.rel (%p307) target = $region44
        $region43: #{tpu_custom_call.1} parent=39 // pred_region
          %310 = dma.done %s303, 512
        $region44: #{tpu_custom_call.1} parent=39 // pred_fallthru
          _
        %s311 = sand.u32 %s26, 1
        %s312 = scalar_lea.sflag [#allocation9], %s311
        %s313 = sand.u32 %s83, 1
        %s314 = smul.addr %s313, 32
        %s315 = scalar_lea.vmem [#allocation8], %s314
        // Predicated region
        $region45: #{tpu_custom_call.1} parent=39 // pred_check
          %p316 = pneg %p96
        $region46: #{tpu_custom_call.1} parent=39 // pred_check_branch
          %318 = sbr.rel (%p316) target = $region48
        $region47: #{tpu_custom_call.1} parent=39 // pred_region
          %319 = dma.done %s312, 512
        $region48: #{tpu_custom_call.1} parent=39 // pred_fallthru
          _
        %s320 = sand.u32 %s26, 1
        %s321 = scalar_lea.sflag [#allocation9], %s320
        %s322 = sand.u32 %s111, 1
        %s323 = smul.addr %s322, 32
        %s324 = scalar_lea.vmem [#allocation10], %s323
        // Predicated region
        $region49: #{tpu_custom_call.1} parent=39 // pred_check
          %p325 = pneg %p124
        $region50: #{tpu_custom_call.1} parent=39 // pred_check_branch
          %327 = sbr.rel (%p325) target = $region52
        $region51: #{tpu_custom_call.1} parent=39 // pred_region
          %328 = dma.done %s321, 512
        $region52: #{tpu_custom_call.1} parent=39 // pred_fallthru
          _
        // Predicated region
        $region53: #{tpu_custom_call.1} parent=39 // pred_check
          %p329 = pneg %p145
        $region54: #{tpu_custom_call.1} parent=39 // pred_check_branch
          %331 = sbr.rel (%p329) target = $region56
        $region55: #{tpu_custom_call.1} parent=39 // pred_region
          %332 = dma.done [#allocation12], 512
        $region56: #{tpu_custom_call.1} parent=39 // pred_fallthru
          _
        %s333 = sand.u32 %s55, 1
        %s334 = scalar_lea.sflag [#allocation6], %s333
        %s335 = sand.u32 %s55, 1
        %s336 = smul.addr %s335, 32
        %s337 = scalar_lea.vmem [#allocation5], %s336
        %p338 = pneg %p68
        %p339 = pneg %p65
        %s340 = sand.u32 %s26, 1
        %s341 = scalar_lea.sflag [#allocation9], %s340
        %s342 = sand.u32 %s83, 1
        %s343 = smul.addr %s342, 32
        %s344 = scalar_lea.vmem [#allocation8], %s343
        %p345 = pneg %p96
        %p346 = pneg %p93
        %s347 = sand.u32 %s26, 1
        %s348 = scalar_lea.sflag [#allocation9], %s347
        %s349 = sand.u32 %s111, 1
        %s350 = smul.addr %s349, 32
        %s351 = scalar_lea.vmem [#allocation10], %s350
        %p352 = pneg %p124
        %p353 = pneg %p121
        %p354 = pneg %p145
        %p355 = pneg %p142
        %p356 = pneg %p166
        %p357 = pneg %p163
        %p358 = pneg %p194
        %p359 = pneg %p191
        %s360 = sand.u32 %s181, 1
        %s361 = scalar_lea.sflag [#allocation7], %s360
        %s362 = sand.u32 %s181, 1
        %s363 = smul.addr %s362, 8
        %s364 = scalar_lea.vmem [#allocation13], %s363
        %p365 = scmp.eq.s32.totalorder %s33, 0
        // Predicated region
        $region57: #{tpu_custom_call.1} parent=39 // pred_check
          %p366 = pneg %p365
        $region58: #{tpu_custom_call.1} parent=39 // pred_check_branch
          %368 = sbr.rel (%p366) target = $region60
        $region59: #{tpu_custom_call.1} parent=39 // pred_region
          %vm369 = vcmask 7168
          %370 = vst.msk [vmem:[#allocation2] sm:$0xff] %vm369, -inf
          %371 = vst.msk [vmem:[#allocation2 + $0x8] sm:$0xff] %vm369, -inf
          %372 = vst.msk [vmem:[#allocation2 + $0x10] sm:$0xff] %vm369, -inf
          %373 = vst.msk [vmem:[#allocation2 + $0x18] sm:$0xff] %vm369, -inf
          %374 = vst.msk [vmem:[#allocation3] sm:$0xff] %vm369, 0.0
          %375 = vst.msk [vmem:[#allocation3 + $0x8] sm:$0xff] %vm369, 0.0
          %376 = vst.msk [vmem:[#allocation3 + $0x10] sm:$0xff] %vm369, 0.0
          %377 = vst.msk [vmem:[#allocation3 + $0x18] sm:$0xff] %vm369, 0.0
          %vm378 = vcmask 64512
          %379 = vst.msk [vmem:[#allocation4] sm:$0xff] %vm378, 0.0
          %380 = vst.msk [vmem:[#allocation4 + $0x8] sm:$0xff] %vm378, 0.0
          %381 = vst.msk [vmem:[#allocation4 + $0x10] sm:$0xff] %vm378, 0.0
          %382 = vst.msk [vmem:[#allocation4 + $0x18] sm:$0xff] %vm378, 0.0
        $region60: #{tpu_custom_call.1} parent=39 // pred_fallthru
          _
        %v383 = vld [vmem:[%s306] sm:$0xff]
        %v384 = vld [vmem:[%s306 + $0x8] sm:$0xff]
        %v385 = vld [vmem:[%s306 + $0x10] sm:$0xff]
        %v386 = vld [vmem:[%s306 + $0x18] sm:$0xff]
        %v387 = vld [vmem:[%s315] sm:$0xff]
        %v388 = vld [vmem:[%s315 + $0x8] sm:$0xff]
        %v389 = vld [vmem:[%s315 + $0x10] sm:$0xff]
        %v390 = vld [vmem:[%s315 + $0x18] sm:$0xff]
        %v391 = vld [vmem:[%s324] sm:$0xff]
        %v392 = vld [vmem:[%s324 + $0x8] sm:$0xff]
        %v393 = vld [vmem:[%s324 + $0x10] sm:$0xff]
        %v394 = vld [vmem:[%s324 + $0x18] sm:$0xff]
        %vm395 = vcmask 64512
        %v397 = vsel %vm395, %v383, 0
        %v400 = vsel %vm395, %v387, 0
        %402 = vmatprep.subr.mxu0 0.0
        %403 = vmatpush1.xpose.msra.mxu0 %v400
        %404 = vmatprep.subr.mxu0 0.0
        %405 = vmatpush1.xpose.msra.mxu0 0.0
        %406 = vmatprep.subr.mxu0 0.0
        %407 = vmatpush1.xpose.msra.mxu0 0.0
        %408 = vmatprep.subr.mxu0 0.0
        %409 = vmatpush1.xpose.msra.mxu0 0.0
        %410 = vmatprep.subr.mxu0 0.0
        %411 = vmatpush1.xpose.msra.mxu0 0.0
        %412 = vmatprep.subr.mxu0 0.0
        %413 = vmatpush1.xpose.msra.mxu0 0.0
        %414 = vmatprep.subr.mxu0 0.0
        %415 = vmatpush1.xpose.msra.mxu0 0.0
        %416 = vmatprep.subr.mxu0 0.0
        %417 = vmatpush1.xpose.msra.mxu0 0.0
        %418 = vmatprep.subr.mxu0 0.0
        %419 = vmatpush1.xpose.msra.mxu0 0.0
        %420 = vmatprep.subr.mxu0 0.0
        %421 = vmatpush1.xpose.msra.mxu0 0.0
        %422 = vmatprep.subr.mxu0 0.0
        %423 = vmatpush1.xpose.msra.mxu0 0.0
        %424 = vmatprep.subr.mxu0 0.0
        %425 = vmatpush1.xpose.msra.mxu0 0.0
        %426 = vmatprep.subr.mxu0 0.0
        %427 = vmatpush1.xpose.msra.mxu0 0.0
        %428 = vmatprep.subr.mxu0 0.0
        %429 = vmatpush1.xpose.msra.mxu0 0.0
        %430 = vmatprep.subr.mxu0 0.0
        %431 = vmatpush1.xpose.msra.mxu0 0.0
        %432 = vmatprep.subr.mxu0 0.0
        %433 = vmatpush1.xpose.msra.mxu0 0.0
        %434 = vmatprep.subr.mxu0 0.0
        %435 = vmatpush1.xpose.msra.mxu0 0.0
        %436 = vmatprep.subr.mxu0 0.0
        %437 = vmatpush1.xpose.msra.mxu0 0.0
        %438 = vmatprep.subr.mxu0 0.0
        %439 = vmatpush1.xpose.msra.mxu0 0.0
        %440 = vmatprep.subr.mxu0 0.0
        %441 = vmatpush1.xpose.msra.mxu0 0.0
        %442 = vmatprep.subr.mxu0 0.0
        %443 = vmatpush1.xpose.msra.mxu0 0.0
        %444 = vmatprep.subr.mxu0 0.0
        %445 = vmatpush1.xpose.msra.mxu0 0.0
        %446 = vmatprep.subr.mxu0 0.0
        %447 = vmatpush1.xpose.msra.mxu0 0.0
        %448 = vmatprep.subr.mxu0 0.0
        %449 = vmatpush1.xpose.msra.mxu0 0.0
        %450 = vmatprep.subr.mxu0 0.0
        %451 = vmatpush1.xpose.msra.mxu0 0.0
        %452 = vmatprep.subr.mxu0 0.0
        %453 = vmatpush1.xpose.msra.mxu0 0.0
        %454 = vmatprep.subr.mxu0 0.0
        %455 = vmatpush1.xpose.msra.mxu0 0.0
        %456 = vmatprep.subr.mxu0 0.0
        %457 = vmatpush1.xpose.msra.mxu0 0.0
        %458 = vmatprep.subr.mxu0 0.0
        %459 = vmatpush1.xpose.msra.mxu0 0.0
        %460 = vmatprep.subr.mxu0 0.0
        %461 = vmatpush1.xpose.msra.mxu0 0.0
        %462 = vmatprep.subr.mxu0 0.0
        %463 = vmatpush1.xpose.msra.mxu0 0.0
        %464 = vmatprep.subr.mxu0 0.0
        %465 = vmatpush1.xpose.msra.mxu0 0.0
        %466 = vmatprep.mubr.f32.mxu0 0.0
        %467 = vmatmul.mubr.f32.gmra.mrb[0].mxu0 %v397
        %v468 = vpop.f32.mrb[0].mxu0
        %v469 = vadd.f32 0.0, %v468
        %v470 = vpop.f32.mrb[0].mxu0
        %471 = vdwg.mxu0
        %v473 = vsel %vm395, %v384, 0
        %v476 = vsel %vm395, %v388, 0
        %478 = vmatprep.subr.mxu0 0.0
        %479 = vmatpush1.xpose.msra.mxu0 %v476
        %480 = vmatprep.subr.mxu0 0.0
        %481 = vmatpush1.xpose.msra.mxu0 0.0
        %482 = vmatprep.subr.mxu0 0.0
        %483 = vmatpush1.xpose.msra.mxu0 0.0
        %484 = vmatprep.subr.mxu0 0.0
        %485 = vmatpush1.xpose.msra.mxu0 0.0
        %486 = vmatprep.subr.mxu0 0.0
        %487 = vmatpush1.xpose.msra.mxu0 0.0
        %488 = vmatprep.subr.mxu0 0.0
        %489 = vmatpush1.xpose.msra.mxu0 0.0
        %490 = vmatprep.subr.mxu0 0.0
        %491 = vmatpush1.xpose.msra.mxu0 0.0
        %492 = vmatprep.subr.mxu0 0.0
        %493 = vmatpush1.xpose.msra.mxu0 0.0
        %494 = vmatprep.subr.mxu0 0.0
        %495 = vmatpush1.xpose.msra.mxu0 0.0
        %496 = vmatprep.subr.mxu0 0.0
        %497 = vmatpush1.xpose.msra.mxu0 0.0
        %498 = vmatprep.subr.mxu0 0.0
        %499 = vmatpush1.xpose.msra.mxu0 0.0
        %500 = vmatprep.subr.mxu0 0.0
        %501 = vmatpush1.xpose.msra.mxu0 0.0
        %502 = vmatprep.subr.mxu0 0.0
        %503 = vmatpush1.xpose.msra.mxu0 0.0
        %504 = vmatprep.subr.mxu0 0.0
        %505 = vmatpush1.xpose.msra.mxu0 0.0
        %506 = vmatprep.subr.mxu0 0.0
        %507 = vmatpush1.xpose.msra.mxu0 0.0
        %508 = vmatprep.subr.mxu0 0.0
        %509 = vmatpush1.xpose.msra.mxu0 0.0
        %510 = vmatprep.subr.mxu0 0.0
        %511 = vmatpush1.xpose.msra.mxu0 0.0
        %512 = vmatprep.subr.mxu0 0.0
        %513 = vmatpush1.xpose.msra.mxu0 0.0
        %514 = vmatprep.subr.mxu0 0.0
        %515 = vmatpush1.xpose.msra.mxu0 0.0
        %516 = vmatprep.subr.mxu0 0.0
        %517 = vmatpush1.xpose.msra.mxu0 0.0
        %518 = vmatprep.subr.mxu0 0.0
        %519 = vmatpush1.xpose.msra.mxu0 0.0
        %520 = vmatprep.subr.mxu0 0.0
        %521 = vmatpush1.xpose.msra.mxu0 0.0
        %522 = vmatprep.subr.mxu0 0.0
        %523 = vmatpush1.xpose.msra.mxu0 0.0
        %524 = vmatprep.subr.mxu0 0.0
        %525 = vmatpush1.xpose.msra.mxu0 0.0
        %526 = vmatprep.subr.mxu0 0.0
        %527 = vmatpush1.xpose.msra.mxu0 0.0
        %528 = vmatprep.subr.mxu0 0.0
        %529 = vmatpush1.xpose.msra.mxu0 0.0
        %530 = vmatprep.subr.mxu0 0.0
        %531 = vmatpush1.xpose.msra.mxu0 0.0
        %532 = vmatprep.subr.mxu0 0.0
        %533 = vmatpush1.xpose.msra.mxu0 0.0
        %534 = vmatprep.subr.mxu0 0.0
        %535 = vmatpush1.xpose.msra.mxu0 0.0
        %536 = vmatprep.subr.mxu0 0.0
        %537 = vmatpush1.xpose.msra.mxu0 0.0
        %538 = vmatprep.subr.mxu0 0.0
        %539 = vmatpush1.xpose.msra.mxu0 0.0
        %540 = vmatprep.subr.mxu0 0.0
        %541 = vmatpush1.xpose.msra.mxu0 0.0
        %542 = vmatprep.mubr.f32.mxu0 0.0
        %543 = vmatmul.mubr.f32.gmra.mrb[0].mxu0 %v473
        %v544 = vpop.f32.mrb[0].mxu0
        %v545 = vadd.f32 0.0, %v544
        %v546 = vpop.f32.mrb[0].mxu0
        %547 = vdwg.mxu0
        %v549 = vsel %vm395, %v385, 0
        %v552 = vsel %vm395, %v389, 0
        %554 = vmatprep.subr.mxu0 0.0
        %555 = vmatpush1.xpose.msra.mxu0 %v552
        %556 = vmatprep.subr.mxu0 0.0
        %557 = vmatpush1.xpose.msra.mxu0 0.0
        %558 = vmatprep.subr.mxu0 0.0
        %559 = vmatpush1.xpose.msra.mxu0 0.0
        %560 = vmatprep.subr.mxu0 0.0
        %561 = vmatpush1.xpose.msra.mxu0 0.0
        %562 = vmatprep.subr.mxu0 0.0
        %563 = vmatpush1.xpose.msra.mxu0 0.0
        %564 = vmatprep.subr.mxu0 0.0
        %565 = vmatpush1.xpose.msra.mxu0 0.0
        %566 = vmatprep.subr.mxu0 0.0
        %567 = vmatpush1.xpose.msra.mxu0 0.0
        %568 = vmatprep.subr.mxu0 0.0
        %569 = vmatpush1.xpose.msra.mxu0 0.0
        %570 = vmatprep.subr.mxu0 0.0
        %571 = vmatpush1.xpose.msra.mxu0 0.0
        %572 = vmatprep.subr.mxu0 0.0
        %573 = vmatpush1.xpose.msra.mxu0 0.0
        %574 = vmatprep.subr.mxu0 0.0
        %575 = vmatpush1.xpose.msra.mxu0 0.0
        %576 = vmatprep.subr.mxu0 0.0
        %577 = vmatpush1.xpose.msra.mxu0 0.0
        %578 = vmatprep.subr.mxu0 0.0
        %579 = vmatpush1.xpose.msra.mxu0 0.0
        %580 = vmatprep.subr.mxu0 0.0
        %581 = vmatpush1.xpose.msra.mxu0 0.0
        %582 = vmatprep.subr.mxu0 0.0
        %583 = vmatpush1.xpose.msra.mxu0 0.0
        %584 = vmatprep.subr.mxu0 0.0
        %585 = vmatpush1.xpose.msra.mxu0 0.0
        %586 = vmatprep.subr.mxu0 0.0
        %587 = vmatpush1.xpose.msra.mxu0 0.0
        %588 = vmatprep.subr.mxu0 0.0
        %589 = vmatpush1.xpose.msra.mxu0 0.0
        %590 = vmatprep.subr.mxu0 0.0
        %591 = vmatpush1.xpose.msra.mxu0 0.0
        %592 = vmatprep.subr.mxu0 0.0
        %593 = vmatpush1.xpose.msra.mxu0 0.0
        %594 = vmatprep.subr.mxu0 0.0
        %595 = vmatpush1.xpose.msra.mxu0 0.0
        %596 = vmatprep.subr.mxu0 0.0
        %597 = vmatpush1.xpose.msra.mxu0 0.0
        %598 = vmatprep.subr.mxu0 0.0
        %599 = vmatpush1.xpose.msra.mxu0 0.0
        %600 = vmatprep.subr.mxu0 0.0
        %601 = vmatpush1.xpose.msra.mxu0 0.0
        %602 = vmatprep.subr.mxu0 0.0
        %603 = vmatpush1.xpose.msra.mxu0 0.0
        %604 = vmatprep.subr.mxu0 0.0
        %605 = vmatpush1.xpose.msra.mxu0 0.0
        %606 = vmatprep.subr.mxu0 0.0
        %607 = vmatpush1.xpose.msra.mxu0 0.0
        %608 = vmatprep.subr.mxu0 0.0
        %609 = vmatpush1.xpose.msra.mxu0 0.0
        %610 = vmatprep.subr.mxu0 0.0
        %611 = vmatpush1.xpose.msra.mxu0 0.0
        %612 = vmatprep.subr.mxu0 0.0
        %613 = vmatpush1.xpose.msra.mxu0 0.0
        %614 = vmatprep.subr.mxu0 0.0
        %615 = vmatpush1.xpose.msra.mxu0 0.0
        %616 = vmatprep.subr.mxu0 0.0
        %617 = vmatpush1.xpose.msra.mxu0 0.0
        %618 = vmatprep.mubr.f32.mxu0 0.0
        %619 = vmatmul.mubr.f32.gmra.mrb[0].mxu0 %v549
        %v620 = vpop.f32.mrb[0].mxu0
        %v621 = vadd.f32 0.0, %v620
        %v622 = vpop.f32.mrb[0].mxu0
        %623 = vdwg.mxu0
        %v625 = vsel %vm395, %v386, 0
        %v628 = vsel %vm395, %v390, 0
        %630 = vmatprep.subr.mxu0 0.0
        %631 = vmatpush1.xpose.msra.mxu0 %v628
        %632 = vmatprep.subr.mxu0 0.0
        %633 = vmatpush1.xpose.msra.mxu0 0.0
        %634 = vmatprep.subr.mxu0 0.0
        %635 = vmatpush1.xpose.msra.mxu0 0.0
        %636 = vmatprep.subr.mxu0 0.0
        %637 = vmatpush1.xpose.msra.mxu0 0.0
        %638 = vmatprep.subr.mxu0 0.0
        %639 = vmatpush1.xpose.msra.mxu0 0.0
        %640 = vmatprep.subr.mxu0 0.0
        %641 = vmatpush1.xpose.msra.mxu0 0.0
        %642 = vmatprep.subr.mxu0 0.0
        %643 = vmatpush1.xpose.msra.mxu0 0.0
        %644 = vmatprep.subr.mxu0 0.0
        %645 = vmatpush1.xpose.msra.mxu0 0.0
        %646 = vmatprep.subr.mxu0 0.0
        %647 = vmatpush1.xpose.msra.mxu0 0.0
        %648 = vmatprep.subr.mxu0 0.0
        %649 = vmatpush1.xpose.msra.mxu0 0.0
        %650 = vmatprep.subr.mxu0 0.0
        %651 = vmatpush1.xpose.msra.mxu0 0.0
        %652 = vmatprep.subr.mxu0 0.0
        %653 = vmatpush1.xpose.msra.mxu0 0.0
        %654 = vmatprep.subr.mxu0 0.0
        %655 = vmatpush1.xpose.msra.mxu0 0.0
        %656 = vmatprep.subr.mxu0 0.0
        %657 = vmatpush1.xpose.msra.mxu0 0.0
        %658 = vmatprep.subr.mxu0 0.0
        %659 = vmatpush1.xpose.msra.mxu0 0.0
        %660 = vmatprep.subr.mxu0 0.0
        %661 = vmatpush1.xpose.msra.mxu0 0.0
        %662 = vmatprep.subr.mxu0 0.0
        %663 = vmatpush1.xpose.msra.mxu0 0.0
        %664 = vmatprep.subr.mxu0 0.0
        %665 = vmatpush1.xpose.msra.mxu0 0.0
        %666 = vmatprep.subr.mxu0 0.0
        %667 = vmatpush1.xpose.msra.mxu0 0.0
        %668 = vmatprep.subr.mxu0 0.0
        %669 = vmatpush1.xpose.msra.mxu0 0.0
        %670 = vmatprep.subr.mxu0 0.0
        %671 = vmatpush1.xpose.msra.mxu0 0.0
        %672 = vmatprep.subr.mxu0 0.0
        %673 = vmatpush1.xpose.msra.mxu0 0.0
        %674 = vmatprep.subr.mxu0 0.0
        %675 = vmatpush1.xpose.msra.mxu0 0.0
        %676 = vmatprep.subr.mxu0 0.0
        %677 = vmatpush1.xpose.msra.mxu0 0.0
        %678 = vmatprep.subr.mxu0 0.0
        %679 = vmatpush1.xpose.msra.mxu0 0.0
        %680 = vmatprep.subr.mxu0 0.0
        %681 = vmatpush1.xpose.msra.mxu0 0.0
        %682 = vmatprep.subr.mxu0 0.0
        %683 = vmatpush1.xpose.msra.mxu0 0.0
        %684 = vmatprep.subr.mxu0 0.0
        %685 = vmatpush1.xpose.msra.mxu0 0.0
        %686 = vmatprep.subr.mxu0 0.0
        %687 = vmatpush1.xpose.msra.mxu0 0.0
        %688 = vmatprep.subr.mxu0 0.0
        %689 = vmatpush1.xpose.msra.mxu0 0.0
        %690 = vmatprep.subr.mxu0 0.0
        %691 = vmatpush1.xpose.msra.mxu0 0.0
        %692 = vmatprep.subr.mxu0 0.0
        %693 = vmatpush1.xpose.msra.mxu0 0.0
        %694 = vmatprep.mubr.f32.mxu0 0.0
        %695 = vmatmul.mubr.f32.gmra.mrb[0].mxu0 %v625
        %v696 = vpop.f32.mrb[0].mxu0
        %v697 = vadd.f32 0.0, %v696
        %v698 = vpop.f32.mrb[0].mxu0
        %699 = vdwg.mxu0
        %v700 = vld [vmem:[#allocation2] sm:$0xff]
        %v701 = vld [vmem:[#allocation2 + $0x8] sm:$0xff]
        %v702 = vld [vmem:[#allocation2 + $0x10] sm:$0xff]
        %v703 = vld [vmem:[#allocation2 + $0x18] sm:$0xff]
        %v704 = vsel %vm395, %v469, -inf
        %705 = vmax.xlane.f32.xlu0 %v704
        %v706 = vpop.xlane.xlu0 %705
        %v707 = vsel %vm395, %v545, -inf
        %708 = vmax.xlane.f32.xlu0 %v707
        %v709 = vpop.xlane.xlu0 %708
        %v710 = vsel %vm395, %v621, -inf
        %711 = vmax.xlane.f32.xlu0 %v710
        %v712 = vpop.xlane.xlu0 %711
        %v713 = vsel %vm395, %v697, -inf
        %714 = vmax.xlane.f32.xlu0 %v713
        %v715 = vpop.xlane.xlu0 %714
        %v716 = vmax.f32 %v700, %v706
        %v717 = vmax.f32 %v701, %v709
        %v718 = vmax.f32 %v702, %v712
        %v719 = vmax.f32 %v703, %v715
        %v720 = vsub.f32 %v700, %v716
        %v721 = vsub.f32 %v701, %v717
        %v722 = vsub.f32 %v702, %v718
        %v723 = vsub.f32 %v703, %v719
        %v724 = vmul.f32 %v720, 1.442695
        %v725 = vpow.pop %v724
        %v726 = vmul.f32 %v721, 1.442695
        %v727 = vpow.pop %v726
        %v728 = vmul.f32 %v722, 1.442695
        %v729 = vpow.pop %v728
        %v730 = vmul.f32 %v723, 1.442695
        %v731 = vpow.pop %v730
        %733 = vset.pattern.permute.xlu0 0
        %734 = vperm.xlu0 %733, %v716
        %v735 = vpop.permute.xlu0 %734
        %738 = vset.pattern.permute.xlu0 0
        %739 = vperm.xlu0 %738, %v717
        %v740 = vpop.permute.xlu0 %739
        %743 = vset.pattern.permute.xlu0 0
        %744 = vperm.xlu0 %743, %v718
        %v745 = vpop.permute.xlu0 %744
        %748 = vset.pattern.permute.xlu0 0
        %749 = vperm.xlu0 %748, %v719
        %v750 = vpop.permute.xlu0 %749
        %v752 = vsub.f32 %v469, %v735
        %v753 = vsub.f32 %v545, %v740
        %v754 = vsub.f32 %v621, %v745
        %v755 = vsub.f32 %v697, %v750
        %v756 = vmul.f32 %v752, 1.442695
        %v757 = vpow.pop %v756
        %v758 = vmul.f32 %v753, 1.442695
        %v759 = vpow.pop %v758
        %v760 = vmul.f32 %v754, 1.442695
        %v761 = vpow.pop %v760
        %v762 = vmul.f32 %v755, 1.442695
        %v763 = vpow.pop %v762
        %v764 = vld [vmem:[#allocation3] sm:$0xff]
        %v765 = vld [vmem:[#allocation3 + $0x8] sm:$0xff]
        %v766 = vld [vmem:[#allocation3 + $0x10] sm:$0xff]
        %v767 = vld [vmem:[#allocation3 + $0x18] sm:$0xff]
        %v768 = vmul.f32 %v725, %v764
        %v769 = vmul.f32 %v727, %v765
        %v770 = vmul.f32 %v729, %v766
        %v771 = vmul.f32 %v731, %v767
        %v772 = vsel %vm395, %v757, 0.0
        %773 = vadd.xlane.f32.xlu0 %v772
        %v774 = vpop.xlane.xlu0 %773
        %v775 = vsel %vm395, %v759, 0.0
        %776 = vadd.xlane.f32.xlu0 %v775
        %v777 = vpop.xlane.xlu0 %776
        %v778 = vsel %vm395, %v761, 0.0
        %779 = vadd.xlane.f32.xlu0 %v778
        %v780 = vpop.xlane.xlu0 %779
        %v781 = vsel %vm395, %v763, 0.0
        %782 = vadd.xlane.f32.xlu0 %v781
        %v783 = vpop.xlane.xlu0 %782
        %v784 = vadd.f32 %v768, %v774
        %v785 = vadd.f32 %v769, %v777
        %v786 = vadd.f32 %v770, %v780
        %v787 = vadd.f32 %v771, %v783
        %vm788 = vcmask 7168
        %789 = vst.msk [vmem:[#allocation3] sm:$0xff] %vm788, %v784
        %790 = vst.msk [vmem:[#allocation3 + $0x8] sm:$0xff] %vm788, %v785
        %791 = vst.msk [vmem:[#allocation3 + $0x10] sm:$0xff] %vm788, %v786
        %792 = vst.msk [vmem:[#allocation3 + $0x18] sm:$0xff] %vm788, %v787
        %v793 = vld [vmem:[#allocation4] sm:$0xff]
        %v794 = vld [vmem:[#allocation4 + $0x8] sm:$0xff]
        %v795 = vld [vmem:[#allocation4 + $0x10] sm:$0xff]
        %v796 = vld [vmem:[#allocation4 + $0x18] sm:$0xff]
        %798 = vset.pattern.permute.xlu0 0
        %799 = vperm.xlu0 %798, %v725
        %v800 = vpop.permute.xlu0 %799
        %803 = vset.pattern.permute.xlu0 0
        %804 = vperm.xlu0 %803, %v727
        %v805 = vpop.permute.xlu0 %804
        %808 = vset.pattern.permute.xlu0 0
        %809 = vperm.xlu0 %808, %v729
        %v810 = vpop.permute.xlu0 %809
        %813 = vset.pattern.permute.xlu0 0
        %814 = vperm.xlu0 %813, %v731
        %v815 = vpop.permute.xlu0 %814
        %v817 = vmul.f32 %v800, %v793
        %v818 = vmul.f32 %v805, %v794
        %v819 = vmul.f32 %v810, %v795
        %v820 = vmul.f32 %v815, %v796
        %v822 = vsel %vm395, %v757, 0
        %824 = vmatprep.subr.mxu0 0.0
        %825 = vmatpush1.msra.mxu0 %v391
        %826 = vmatprep.subr.mxu0 0.0
        %827 = vmatpush1.msra.mxu0 0.0
        %828 = vmatprep.subr.mxu0 0.0
        %829 = vmatpush1.msra.mxu0 0.0
        %830 = vmatprep.subr.mxu0 0.0
        %831 = vmatpush1.msra.mxu0 0.0
        %832 = vmatprep.subr.mxu0 0.0
        %833 = vmatpush1.msra.mxu0 0.0
        %834 = vmatprep.subr.mxu0 0.0
        %835 = vmatpush1.msra.mxu0 0.0
        %836 = vmatprep.subr.mxu0 0.0
        %837 = vmatpush1.msra.mxu0 0.0
        %838 = vmatprep.subr.mxu0 0.0
        %839 = vmatpush1.msra.mxu0 0.0
        %840 = vmatprep.subr.mxu0 0.0
        %841 = vmatpush1.msra.mxu0 0.0
        %842 = vmatprep.subr.mxu0 0.0
        %843 = vmatpush1.msra.mxu0 0.0
        %844 = vmatprep.subr.mxu0 0.0
        %845 = vmatpush1.msra.mxu0 0.0
        %846 = vmatprep.subr.mxu0 0.0
        %847 = vmatpush1.msra.mxu0 0.0
        %848 = vmatprep.subr.mxu0 0.0
        %849 = vmatpush1.msra.mxu0 0.0
        %850 = vmatprep.subr.mxu0 0.0
        %851 = vmatpush1.msra.mxu0 0.0
        %852 = vmatprep.subr.mxu0 0.0
        %853 = vmatpush1.msra.mxu0 0.0
        %854 = vmatprep.subr.mxu0 0.0
        %855 = vmatpush1.msra.mxu0 0.0
        %856 = vmatprep.subr.mxu0 0.0
        %857 = vmatpush1.msra.mxu0 0.0
        %858 = vmatprep.subr.mxu0 0.0
        %859 = vmatpush1.msra.mxu0 0.0
        %860 = vmatprep.subr.mxu0 0.0
        %861 = vmatpush1.msra.mxu0 0.0
        %862 = vmatprep.subr.mxu0 0.0
        %863 = vmatpush1.msra.mxu0 0.0
        %864 = vmatprep.subr.mxu0 0.0
        %865 = vmatpush1.msra.mxu0 0.0
        %866 = vmatprep.subr.mxu0 0.0
        %867 = vmatpush1.msra.mxu0 0.0
        %868 = vmatprep.subr.mxu0 0.0
        %869 = vmatpush1.msra.mxu0 0.0
        %870 = vmatprep.subr.mxu0 0.0
        %871 = vmatpush1.msra.mxu0 0.0
        %872 = vmatprep.subr.mxu0 0.0
        %873 = vmatpush1.msra.mxu0 0.0
        %874 = vmatprep.subr.mxu0 0.0
        %875 = vmatpush1.msra.mxu0 0.0
        %876 = vmatprep.subr.mxu0 0.0
        %877 = vmatpush1.msra.mxu0 0.0
        %878 = vmatprep.subr.mxu0 0.0
        %879 = vmatpush1.msra.mxu0 0.0
        %880 = vmatprep.subr.mxu0 0.0
        %881 = vmatpush1.msra.mxu0 0.0
        %882 = vmatprep.subr.mxu0 0.0
        %883 = vmatpush1.msra.mxu0 0.0
        %884 = vmatprep.subr.mxu0 0.0
        %885 = vmatpush1.msra.mxu0 0.0
        %886 = vmatprep.subr.mxu0 0.0
        %887 = vmatpush1.msra.mxu0 0.0
        %888 = vmatprep.mubr.f32.mxu0 0.0
        %889 = vmatmul.mubr.f32.gmra.mrb[0].mxu0 %v822
        %v890 = vpop.f32.mrb[0].mxu0
        %v891 = vadd.f32 0.0, %v890
        %v892 = vpop.f32.mrb[0].mxu0
        %893 = vdwg.mxu0
        %v895 = vsel %vm395, %v759, 0
        %897 = vmatprep.subr.mxu0 0.0
        %898 = vmatpush1.msra.mxu0 %v392
        %899 = vmatprep.subr.mxu0 0.0
        %900 = vmatpush1.msra.mxu0 0.0
        %901 = vmatprep.subr.mxu0 0.0
        %902 = vmatpush1.msra.mxu0 0.0
        %903 = vmatprep.subr.mxu0 0.0
        %904 = vmatpush1.msra.mxu0 0.0
        %905 = vmatprep.subr.mxu0 0.0
        %906 = vmatpush1.msra.mxu0 0.0
        %907 = vmatprep.subr.mxu0 0.0
        %908 = vmatpush1.msra.mxu0 0.0
        %909 = vmatprep.subr.mxu0 0.0
        %910 = vmatpush1.msra.mxu0 0.0
        %911 = vmatprep.subr.mxu0 0.0
        %912 = vmatpush1.msra.mxu0 0.0
        %913 = vmatprep.subr.mxu0 0.0
        %914 = vmatpush1.msra.mxu0 0.0
        %915 = vmatprep.subr.mxu0 0.0
        %916 = vmatpush1.msra.mxu0 0.0
        %917 = vmatprep.subr.mxu0 0.0
        %918 = vmatpush1.msra.mxu0 0.0
        %919 = vmatprep.subr.mxu0 0.0
        %920 = vmatpush1.msra.mxu0 0.0
        %921 = vmatprep.subr.mxu0 0.0
        %922 = vmatpush1.msra.mxu0 0.0
        %923 = vmatprep.subr.mxu0 0.0
        %924 = vmatpush1.msra.mxu0 0.0
        %925 = vmatprep.subr.mxu0 0.0
        %926 = vmatpush1.msra.mxu0 0.0
        %927 = vmatprep.subr.mxu0 0.0
        %928 = vmatpush1.msra.mxu0 0.0
        %929 = vmatprep.subr.mxu0 0.0
        %930 = vmatpush1.msra.mxu0 0.0
        %931 = vmatprep.subr.mxu0 0.0
        %932 = vmatpush1.msra.mxu0 0.0
        %933 = vmatprep.subr.mxu0 0.0
        %934 = vmatpush1.msra.mxu0 0.0
        %935 = vmatprep.subr.mxu0 0.0
        %936 = vmatpush1.msra.mxu0 0.0
        %937 = vmatprep.subr.mxu0 0.0
        %938 = vmatpush1.msra.mxu0 0.0
        %939 = vmatprep.subr.mxu0 0.0
        %940 = vmatpush1.msra.mxu0 0.0
        %941 = vmatprep.subr.mxu0 0.0
        %942 = vmatpush1.msra.mxu0 0.0
        %943 = vmatprep.subr.mxu0 0.0
        %944 = vmatpush1.msra.mxu0 0.0
        %945 = vmatprep.subr.mxu0 0.0
        %946 = vmatpush1.msra.mxu0 0.0
        %947 = vmatprep.subr.mxu0 0.0
        %948 = vmatpush1.msra.mxu0 0.0
        %949 = vmatprep.subr.mxu0 0.0
        %950 = vmatpush1.msra.mxu0 0.0
        %951 = vmatprep.subr.mxu0 0.0
        %952 = vmatpush1.msra.mxu0 0.0
        %953 = vmatprep.subr.mxu0 0.0
        %954 = vmatpush1.msra.mxu0 0.0
        %955 = vmatprep.subr.mxu0 0.0
        %956 = vmatpush1.msra.mxu0 0.0
        %957 = vmatprep.subr.mxu0 0.0
        %958 = vmatpush1.msra.mxu0 0.0
        %959 = vmatprep.subr.mxu0 0.0
        %960 = vmatpush1.msra.mxu0 0.0
        %961 = vmatprep.mubr.f32.mxu0 0.0
        %962 = vmatmul.mubr.f32.gmra.mrb[0].mxu0 %v895
        %v963 = vpop.f32.mrb[0].mxu0
        %v964 = vadd.f32 0.0, %v963
        %v965 = vpop.f32.mrb[0].mxu0
        %966 = vdwg.mxu0
        %v968 = vsel %vm395, %v761, 0
        %970 = vmatprep.subr.mxu0 0.0
        %971 = vmatpush1.msra.mxu0 %v393
        %972 = vmatprep.subr.mxu0 0.0
        %973 = vmatpush1.msra.mxu0 0.0
        %974 = vmatprep.subr.mxu0 0.0
        %975 = vmatpush1.msra.mxu0 0.0
        %976 = vmatprep.subr.mxu0 0.0
        %977 = vmatpush1.msra.mxu0 0.0
        %978 = vmatprep.subr.mxu0 0.0
        %979 = vmatpush1.msra.mxu0 0.0
        %980 = vmatprep.subr.mxu0 0.0
        %981 = vmatpush1.msra.mxu0 0.0
        %982 = vmatprep.subr.mxu0 0.0
        %983 = vmatpush1.msra.mxu0 0.0
        %984 = vmatprep.subr.mxu0 0.0
        %985 = vmatpush1.msra.mxu0 0.0
        %986 = vmatprep.subr.mxu0 0.0
        %987 = vmatpush1.msra.mxu0 0.0
        %988 = vmatprep.subr.mxu0 0.0
        %989 = vmatpush1.msra.mxu0 0.0
        %990 = vmatprep.subr.mxu0 0.0
        %991 = vmatpush1.msra.mxu0 0.0
        %992 = vmatprep.subr.mxu0 0.0
        %993 = vmatpush1.msra.mxu0 0.0
        %994 = vmatprep.subr.mxu0 0.0
        %995 = vmatpush1.msra.mxu0 0.0
        %996 = vmatprep.subr.mxu0 0.0
        %997 = vmatpush1.msra.mxu0 0.0
        %998 = vmatprep.subr.mxu0 0.0
        %999 = vmatpush1.msra.mxu0 0.0
        %1000 = vmatprep.subr.mxu0 0.0
        %1001 = vmatpush1.msra.mxu0 0.0
        %1002 = vmatprep.subr.mxu0 0.0
        %1003 = vmatpush1.msra.mxu0 0.0
        %1004 = vmatprep.subr.mxu0 0.0
        %1005 = vmatpush1.msra.mxu0 0.0
        %1006 = vmatprep.subr.mxu0 0.0
        %1007 = vmatpush1.msra.mxu0 0.0
        %1008 = vmatprep.subr.mxu0 0.0
        %1009 = vmatpush1.msra.mxu0 0.0
        %1010 = vmatprep.subr.mxu0 0.0
        %1011 = vmatpush1.msra.mxu0 0.0
        %1012 = vmatprep.subr.mxu0 0.0
        %1013 = vmatpush1.msra.mxu0 0.0
        %1014 = vmatprep.subr.mxu0 0.0
        %1015 = vmatpush1.msra.mxu0 0.0
        %1016 = vmatprep.subr.mxu0 0.0
        %1017 = vmatpush1.msra.mxu0 0.0
        %1018 = vmatprep.subr.mxu0 0.0
        %1019 = vmatpush1.msra.mxu0 0.0
        %1020 = vmatprep.subr.mxu0 0.0
        %1021 = vmatpush1.msra.mxu0 0.0
        %1022 = vmatprep.subr.mxu0 0.0
        %1023 = vmatpush1.msra.mxu0 0.0
        %1024 = vmatprep.subr.mxu0 0.0
        %1025 = vmatpush1.msra.mxu0 0.0
        %1026 = vmatprep.subr.mxu0 0.0
        %1027 = vmatpush1.msra.mxu0 0.0
        %1028 = vmatprep.subr.mxu0 0.0
        %1029 = vmatpush1.msra.mxu0 0.0
        %1030 = vmatprep.subr.mxu0 0.0
        %1031 = vmatpush1.msra.mxu0 0.0
        %1032 = vmatprep.subr.mxu0 0.0
        %1033 = vmatpush1.msra.mxu0 0.0
        %1034 = vmatprep.mubr.f32.mxu0 0.0
        %1035 = vmatmul.mubr.f32.gmra.mrb[0].mxu0 %v968
        %v1036 = vpop.f32.mrb[0].mxu0
        %v1037 = vadd.f32 0.0, %v1036
        %v1038 = vpop.f32.mrb[0].mxu0
        %1039 = vdwg.mxu0
        %v1041 = vsel %vm395, %v763, 0
        %1043 = vmatprep.subr.mxu0 0.0
        %1044 = vmatpush1.msra.mxu0 %v394
        %1045 = vmatprep.subr.mxu0 0.0
        %1046 = vmatpush1.msra.mxu0 0.0
        %1047 = vmatprep.subr.mxu0 0.0
        %1048 = vmatpush1.msra.mxu0 0.0
        %1049 = vmatprep.subr.mxu0 0.0
        %1050 = vmatpush1.msra.mxu0 0.0
        %1051 = vmatprep.subr.mxu0 0.0
        %1052 = vmatpush1.msra.mxu0 0.0
        %1053 = vmatprep.subr.mxu0 0.0
        %1054 = vmatpush1.msra.mxu0 0.0
        %1055 = vmatprep.subr.mxu0 0.0
        %1056 = vmatpush1.msra.mxu0 0.0
        %1057 = vmatprep.subr.mxu0 0.0
        %1058 = vmatpush1.msra.mxu0 0.0
        %1059 = vmatprep.subr.mxu0 0.0
        %1060 = vmatpush1.msra.mxu0 0.0
        %1061 = vmatprep.subr.mxu0 0.0
        %1062 = vmatpush1.msra.mxu0 0.0
        %1063 = vmatprep.subr.mxu0 0.0
        %1064 = vmatpush1.msra.mxu0 0.0
        %1065 = vmatprep.subr.mxu0 0.0
        %1066 = vmatpush1.msra.mxu0 0.0
        %1067 = vmatprep.subr.mxu0 0.0
        %1068 = vmatpush1.msra.mxu0 0.0
        %1069 = vmatprep.subr.mxu0 0.0
        %1070 = vmatpush1.msra.mxu0 0.0
        %1071 = vmatprep.subr.mxu0 0.0
        %1072 = vmatpush1.msra.mxu0 0.0
        %1073 = vmatprep.subr.mxu0 0.0
        %1074 = vmatpush1.msra.mxu0 0.0
        %1075 = vmatprep.subr.mxu0 0.0
        %1076 = vmatpush1.msra.mxu0 0.0
        %1077 = vmatprep.subr.mxu0 0.0
        %1078 = vmatpush1.msra.mxu0 0.0
        %1079 = vmatprep.subr.mxu0 0.0
        %1080 = vmatpush1.msra.mxu0 0.0
        %1081 = vmatprep.subr.mxu0 0.0
        %1082 = vmatpush1.msra.mxu0 0.0
        %1083 = vmatprep.subr.mxu0 0.0
        %1084 = vmatpush1.msra.mxu0 0.0
        %1085 = vmatprep.subr.mxu0 0.0
        %1086 = vmatpush1.msra.mxu0 0.0
        %1087 = vmatprep.subr.mxu0 0.0
        %1088 = vmatpush1.msra.mxu0 0.0
        %1089 = vmatprep.subr.mxu0 0.0
        %1090 = vmatpush1.msra.mxu0 0.0
        %1091 = vmatprep.subr.mxu0 0.0
        %1092 = vmatpush1.msra.mxu0 0.0
        %1093 = vmatprep.subr.mxu0 0.0
        %1094 = vmatpush1.msra.mxu0 0.0
        %1095 = vmatprep.subr.mxu0 0.0
        %1096 = vmatpush1.msra.mxu0 0.0
        %1097 = vmatprep.subr.mxu0 0.0
        %1098 = vmatpush1.msra.mxu0 0.0
        %1099 = vmatprep.subr.mxu0 0.0
        %1100 = vmatpush1.msra.mxu0 0.0
        %1101 = vmatprep.subr.mxu0 0.0
        %1102 = vmatpush1.msra.mxu0 0.0
        %1103 = vmatprep.subr.mxu0 0.0
        %1104 = vmatpush1.msra.mxu0 0.0
        %1105 = vmatprep.subr.mxu0 0.0
        %1106 = vmatpush1.msra.mxu0 0.0
        %1107 = vmatprep.mubr.f32.mxu0 0.0
        %1108 = vmatmul.mubr.f32.gmra.mrb[0].mxu0 %v1041
        %v1109 = vpop.f32.mrb[0].mxu0
        %v1110 = vadd.f32 0.0, %v1109
        %v1111 = vpop.f32.mrb[0].mxu0
        %1112 = vdwg.mxu0
        %v1113 = vadd.f32 %v817, %v891
        %v1114 = vadd.f32 %v818, %v964
        %v1115 = vadd.f32 %v819, %v1037
        %v1116 = vadd.f32 %v820, %v1110
        %1117 = vst.msk [vmem:[#allocation4] sm:$0xff] %vm395, %v1113
        %1118 = vst.msk [vmem:[#allocation4 + $0x8] sm:$0xff] %vm395, %v1114
        %1119 = vst.msk [vmem:[#allocation4 + $0x10] sm:$0xff] %vm395, %v1115
        %1120 = vst.msk [vmem:[#allocation4 + $0x18] sm:$0xff] %vm395, %v1116
        %1121 = vst.msk [vmem:[#allocation2] sm:$0xff] %vm788, %v716
        %1122 = vst.msk [vmem:[#allocation2 + $0x8] sm:$0xff] %vm788, %v717
        %1123 = vst.msk [vmem:[#allocation2 + $0x10] sm:$0xff] %vm788, %v718
        %1124 = vst.msk [vmem:[#allocation2 + $0x18] sm:$0xff] %vm788, %v719
        // Predicated region
        $region61: #{tpu_custom_call.1} parent=39 // pred_check
          %p1125 = pneg %p365
        $region62: #{tpu_custom_call.1} parent=39 // pred_check_branch
          %1127 = sbr.rel (%p1125) target = $region64
        $region63: #{tpu_custom_call.1} parent=39 // pred_region
          %v1128 = vld [vmem:[#allocation3] sm:$0xff]
          %v1129 = vld [vmem:[#allocation3 + $0x8] sm:$0xff]
          %v1130 = vld [vmem:[#allocation3 + $0x10] sm:$0xff]
          %v1131 = vld [vmem:[#allocation3 + $0x18] sm:$0xff]
          %v1132 = vrcp.pop %v1128
          %v1133 = vmul.f32 1.0, %v1132
          %v1134 = vrcp.pop %v1129
          %v1135 = vmul.f32 1.0, %v1134
          %v1136 = vrcp.pop %v1130
          %v1137 = vmul.f32 1.0, %v1136
          %v1138 = vrcp.pop %v1131
          %v1139 = vmul.f32 1.0, %v1138
          %v1140 = vld [vmem:[#allocation4] sm:$0xff]
          %1142 = vset.pattern.permute.xlu0 0
          %1143 = vperm.xlu0 %1142, %v1133
          %v1144 = vpop.permute.xlu0 %1143
          %v1146 = vmul.f32 %v1140, %v1144
          %v1147 = vld [vmem:[#allocation11] sm:$0xff]
          %s1148 = scalar_lea.vmem [#allocation4], 8
          %v1149 = vld [vmem:[%s1148] sm:$0xff]
          %1151 = vset.pattern.permute.xlu0 0
          %1152 = vperm.xlu0 %1151, %v1135
          %v1153 = vpop.permute.xlu0 %1152
          %v1155 = vmul.f32 %v1149, %v1153
          %s1156 = scalar_lea.vmem [#allocation11], 8
          %v1157 = vld [vmem:[%s1156] sm:$0xff]
          %v1159 = vsel %vm395, %v1155, 0
          %1161 = vmatprep.subr.mxu0 0.0
          %1162 = vmatpush1.msra.mxu0 %v1157
          %1163 = vmatprep.subr.mxu0 0.0
          %1164 = vmatpush1.msra.mxu0 0.0
          %1165 = vmatprep.subr.mxu0 0.0
          %1166 = vmatpush1.msra.mxu0 0.0
          %1167 = vmatprep.subr.mxu0 0.0
          %1168 = vmatpush1.msra.mxu0 0.0
          %1169 = vmatprep.subr.mxu0 0.0
          %1170 = vmatpush1.msra.mxu0 0.0
          %1171 = vmatprep.subr.mxu0 0.0
          %1172 = vmatpush1.msra.mxu0 0.0
          %1173 = vmatprep.subr.mxu0 0.0
          %1174 = vmatpush1.msra.mxu0 0.0
          %1175 = vmatprep.subr.mxu0 0.0
          %1176 = vmatpush1.msra.mxu0 0.0
          %1177 = vmatprep.subr.mxu0 0.0
          %1178 = vmatpush1.msra.mxu0 0.0
          %1179 = vmatprep.subr.mxu0 0.0
          %1180 = vmatpush1.msra.mxu0 0.0
          %1181 = vmatprep.subr.mxu0 0.0
          %1182 = vmatpush1.msra.mxu0 0.0
          %1183 = vmatprep.subr.mxu0 0.0
          %1184 = vmatpush1.msra.mxu0 0.0
          %1185 = vmatprep.subr.mxu0 0.0
          %1186 = vmatpush1.msra.mxu0 0.0
          %1187 = vmatprep.subr.mxu0 0.0
          %1188 = vmatpush1.msra.mxu0 0.0
          %1189 = vmatprep.subr.mxu0 0.0
          %1190 = vmatpush1.msra.mxu0 0.0
          %1191 = vmatprep.subr.mxu0 0.0
          %1192 = vmatpush1.msra.mxu0 0.0
          %1193 = vmatprep.subr.mxu0 0.0
          %1194 = vmatpush1.msra.mxu0 0.0
          %1195 = vmatprep.subr.mxu0 0.0
          %1196 = vmatpush1.msra.mxu0 0.0
          %1197 = vmatprep.subr.mxu0 0.0
          %1198 = vmatpush1.msra.mxu0 0.0
          %1199 = vmatprep.subr.mxu0 0.0
          %1200 = vmatpush1.msra.mxu0 0.0
          %1201 = vmatprep.subr.mxu0 0.0
          %1202 = vmatpush1.msra.mxu0 0.0
          %1203 = vmatprep.subr.mxu0 0.0
          %1204 = vmatpush1.msra.mxu0 0.0
          %1205 = vmatprep.subr.mxu0 0.0
          %1206 = vmatpush1.msra.mxu0 0.0
          %1207 = vmatprep.subr.mxu0 0.0
          %1208 = vmatpush1.msra.mxu0 0.0
          %1209 = vmatprep.subr.mxu0 0.0
          %1210 = vmatpush1.msra.mxu0 0.0
          %1211 = vmatprep.subr.mxu0 0.0
          %1212 = vmatpush1.msra.mxu0 0.0
          %1213 = vmatprep.subr.mxu0 0.0
          %1214 = vmatpush1.msra.mxu0 0.0
          %1215 = vmatprep.subr.mxu0 0.0
          %1216 = vmatpush1.msra.mxu0 0.0
          %1217 = vmatprep.subr.mxu0 0.0
          %1218 = vmatpush1.msra.mxu0 0.0
          %1219 = vmatprep.subr.mxu0 0.0
          %1220 = vmatpush1.msra.mxu0 0.0
          %1221 = vmatprep.subr.mxu0 0.0
          %1222 = vmatpush1.msra.mxu0 0.0
          %1223 = vmatprep.subr.mxu0 0.0
          %1224 = vmatpush1.msra.mxu0 0.0
          %1225 = vmatprep.mubr.f32.mxu0 0.0
          %1226 = vmatmul.mubr.f32.gmra.mrb[0].mxu0 %v1159
          %v1227 = vpop.f32.mrb[0].mxu0
          %v1228 = vadd.f32 0.0, %v1227
          %v1229 = vpop.f32.mrb[0].mxu0
          %1230 = vdwg.mxu0
          %v1232 = vsel %vm395, %v1146, 0
          %1234 = vmatprep.subr.mxu0 0.0
          %1235 = vmatpush1.msra.mxu0 %v1147
          %1236 = vmatprep.subr.mxu0 0.0
          %1237 = vmatpush1.msra.mxu0 0.0
          %1238 = vmatprep.subr.mxu0 0.0
          %1239 = vmatpush1.msra.mxu0 0.0
          %1240 = vmatprep.subr.mxu0 0.0
          %1241 = vmatpush1.msra.mxu0 0.0
          %1242 = vmatprep.subr.mxu0 0.0
          %1243 = vmatpush1.msra.mxu0 0.0
          %1244 = vmatprep.subr.mxu0 0.0
          %1245 = vmatpush1.msra.mxu0 0.0
          %1246 = vmatprep.subr.mxu0 0.0
          %1247 = vmatpush1.msra.mxu0 0.0
          %1248 = vmatprep.subr.mxu0 0.0
          %1249 = vmatpush1.msra.mxu0 0.0
          %1250 = vmatprep.subr.mxu0 0.0
          %1251 = vmatpush1.msra.mxu0 0.0
          %1252 = vmatprep.subr.mxu0 0.0
          %1253 = vmatpush1.msra.mxu0 0.0
          %1254 = vmatprep.subr.mxu0 0.0
          %1255 = vmatpush1.msra.mxu0 0.0
          %1256 = vmatprep.subr.mxu0 0.0
          %1257 = vmatpush1.msra.mxu0 0.0
          %1258 = vmatprep.subr.mxu0 0.0
          %1259 = vmatpush1.msra.mxu0 0.0
          %1260 = vmatprep.subr.mxu0 0.0
          %1261 = vmatpush1.msra.mxu0 0.0
          %1262 = vmatprep.subr.mxu0 0.0
          %1263 = vmatpush1.msra.mxu0 0.0
          %1264 = vmatprep.subr.mxu0 0.0
          %1265 = vmatpush1.msra.mxu0 0.0
          %1266 = vmatprep.subr.mxu0 0.0
          %1267 = vmatpush1.msra.mxu0 0.0
          %1268 = vmatprep.subr.mxu0 0.0
          %1269 = vmatpush1.msra.mxu0 0.0
          %1270 = vmatprep.subr.mxu0 0.0
          %1271 = vmatpush1.msra.mxu0 0.0
          %1272 = vmatprep.subr.mxu0 0.0
          %1273 = vmatpush1.msra.mxu0 0.0
          %1274 = vmatprep.subr.mxu0 0.0
          %1275 = vmatpush1.msra.mxu0 0.0
          %1276 = vmatprep.subr.mxu0 0.0
          %1277 = vmatpush1.msra.mxu0 0.0
          %1278 = vmatprep.subr.mxu0 0.0
          %1279 = vmatpush1.msra.mxu0 0.0
          %1280 = vmatprep.subr.mxu0 0.0
          %1281 = vmatpush1.msra.mxu0 0.0
          %1282 = vmatprep.subr.mxu0 0.0
          %1283 = vmatpush1.msra.mxu0 0.0
          %1284 = vmatprep.subr.mxu0 0.0
          %1285 = vmatpush1.msra.mxu0 0.0
          %1286 = vmatprep.subr.mxu0 0.0
          %1287 = vmatpush1.msra.mxu0 0.0
          %1288 = vmatprep.subr.mxu0 0.0
          %1289 = vmatpush1.msra.mxu0 0.0
          %1290 = vmatprep.subr.mxu0 0.0
          %1291 = vmatpush1.msra.mxu0 0.0
          %1292 = vmatprep.subr.mxu0 0.0
          %1293 = vmatpush1.msra.mxu0 0.0
          %1294 = vmatprep.subr.mxu0 0.0
          %1295 = vmatpush1.msra.mxu0 0.0
          %1296 = vmatprep.subr.mxu0 0.0
          %1297 = vmatpush1.msra.mxu0 0.0
          %1298 = vmatprep.mubr.f32.mxu0 0.0
          %1299 = vmatmul.mubr.f32.gmra.mrb[0].mxu0 %v1232
          %v1300 = vpop.f32.mrb[0].mxu0
          %v1301 = vadd.f32 %v1228, %v1300
          %v1302 = vpop.f32.mrb[0].mxu0
          %1303 = vdwg.mxu0
          %s1304 = scalar_lea.vmem [#allocation4], 16
          %v1305 = vld [vmem:[%s1304] sm:$0xff]
          %1307 = vset.pattern.permute.xlu0 0
          %1308 = vperm.xlu0 %1307, %v1137
          %v1309 = vpop.permute.xlu0 %1308
          %v1311 = vmul.f32 %v1305, %v1309
          %s1312 = scalar_lea.vmem [#allocation11], 16
          %v1313 = vld [vmem:[%s1312] sm:$0xff]
          %v1315 = vsel %vm395, %v1311, 0
          %1317 = vmatprep.subr.mxu0 0.0
          %1318 = vmatpush1.msra.mxu0 %v1313
          %1319 = vmatprep.subr.mxu0 0.0
          %1320 = vmatpush1.msra.mxu0 0.0
          %1321 = vmatprep.subr.mxu0 0.0
          %1322 = vmatpush1.msra.mxu0 0.0
          %1323 = vmatprep.subr.mxu0 0.0
          %1324 = vmatpush1.msra.mxu0 0.0
          %1325 = vmatprep.subr.mxu0 0.0
          %1326 = vmatpush1.msra.mxu0 0.0
          %1327 = vmatprep.subr.mxu0 0.0
          %1328 = vmatpush1.msra.mxu0 0.0
          %1329 = vmatprep.subr.mxu0 0.0
          %1330 = vmatpush1.msra.mxu0 0.0
          %1331 = vmatprep.subr.mxu0 0.0
          %1332 = vmatpush1.msra.mxu0 0.0
          %1333 = vmatprep.subr.mxu0 0.0
          %1334 = vmatpush1.msra.mxu0 0.0
          %1335 = vmatprep.subr.mxu0 0.0
          %1336 = vmatpush1.msra.mxu0 0.0
          %1337 = vmatprep.subr.mxu0 0.0
          %1338 = vmatpush1.msra.mxu0 0.0
          %1339 = vmatprep.subr.mxu0 0.0
          %1340 = vmatpush1.msra.mxu0 0.0
          %1341 = vmatprep.subr.mxu0 0.0
          %1342 = vmatpush1.msra.mxu0 0.0
          %1343 = vmatprep.subr.mxu0 0.0
          %1344 = vmatpush1.msra.mxu0 0.0
          %1345 = vmatprep.subr.mxu0 0.0
          %1346 = vmatpush1.msra.mxu0 0.0
          %1347 = vmatprep.subr.mxu0 0.0
          %1348 = vmatpush1.msra.mxu0 0.0
          %1349 = vmatprep.subr.mxu0 0.0
          %1350 = vmatpush1.msra.mxu0 0.0
          %1351 = vmatprep.subr.mxu0 0.0
          %1352 = vmatpush1.msra.mxu0 0.0
          %1353 = vmatprep.subr.mxu0 0.0
          %1354 = vmatpush1.msra.mxu0 0.0
          %1355 = vmatprep.subr.mxu0 0.0
          %1356 = vmatpush1.msra.mxu0 0.0
          %1357 = vmatprep.subr.mxu0 0.0
          %1358 = vmatpush1.msra.mxu0 0.0
          %1359 = vmatprep.subr.mxu0 0.0
          %1360 = vmatpush1.msra.mxu0 0.0
          %1361 = vmatprep.subr.mxu0 0.0
          %1362 = vmatpush1.msra.mxu0 0.0
          %1363 = vmatprep.subr.mxu0 0.0
          %1364 = vmatpush1.msra.mxu0 0.0
          %1365 = vmatprep.subr.mxu0 0.0
          %1366 = vmatpush1.msra.mxu0 0.0
          %1367 = vmatprep.subr.mxu0 0.0
          %1368 = vmatpush1.msra.mxu0 0.0
          %1369 = vmatprep.subr.mxu0 0.0
          %1370 = vmatpush1.msra.mxu0 0.0
          %1371 = vmatprep.subr.mxu0 0.0
          %1372 = vmatpush1.msra.mxu0 0.0
          %1373 = vmatprep.subr.mxu0 0.0
          %1374 = vmatpush1.msra.mxu0 0.0
          %1375 = vmatprep.subr.mxu0 0.0
          %1376 = vmatpush1.msra.mxu0 0.0
          %1377 = vmatprep.subr.mxu0 0.0
          %1378 = vmatpush1.msra.mxu0 0.0
          %1379 = vmatprep.subr.mxu0 0.0
          %1380 = vmatpush1.msra.mxu0 0.0
          %1381 = vmatprep.mubr.f32.mxu0 0.0
          %1382 = vmatmul.mubr.f32.gmra.mrb[0].mxu0 %v1315
          %v1383 = vpop.f32.mrb[0].mxu0
          %v1384 = vadd.f32 0.0, %v1383
          %v1385 = vpop.f32.mrb[0].mxu0
          %1386 = vdwg.mxu0
          %v1387 = vadd.f32 %v1301, %v1384
          %s1388 = scalar_lea.vmem [#allocation4], 24
          %v1389 = vld [vmem:[%s1388] sm:$0xff]
          %1391 = vset.pattern.permute.xlu0 0
          %1392 = vperm.xlu0 %1391, %v1139
          %v1393 = vpop.permute.xlu0 %1392
          %v1395 = vmul.f32 %v1389, %v1393
          %s1396 = scalar_lea.vmem [#allocation11], 24
          %v1397 = vld [vmem:[%s1396] sm:$0xff]
          %v1399 = vsel %vm395, %v1395, 0
          %1401 = vmatprep.subr.mxu0 0.0
          %1402 = vmatpush1.msra.mxu0 %v1397
          %1403 = vmatprep.subr.mxu0 0.0
          %1404 = vmatpush1.msra.mxu0 0.0
          %1405 = vmatprep.subr.mxu0 0.0
          %1406 = vmatpush1.msra.mxu0 0.0
          %1407 = vmatprep.subr.mxu0 0.0
          %1408 = vmatpush1.msra.mxu0 0.0
          %1409 = vmatprep.subr.mxu0 0.0
          %1410 = vmatpush1.msra.mxu0 0.0
          %1411 = vmatprep.subr.mxu0 0.0
          %1412 = vmatpush1.msra.mxu0 0.0
          %1413 = vmatprep.subr.mxu0 0.0
          %1414 = vmatpush1.msra.mxu0 0.0
          %1415 = vmatprep.subr.mxu0 0.0
          %1416 = vmatpush1.msra.mxu0 0.0
          %1417 = vmatprep.subr.mxu0 0.0
          %1418 = vmatpush1.msra.mxu0 0.0
          %1419 = vmatprep.subr.mxu0 0.0
          %1420 = vmatpush1.msra.mxu0 0.0
          %1421 = vmatprep.subr.mxu0 0.0
          %1422 = vmatpush1.msra.mxu0 0.0
          %1423 = vmatprep.subr.mxu0 0.0
          %1424 = vmatpush1.msra.mxu0 0.0
          %1425 = vmatprep.subr.mxu0 0.0
          %1426 = vmatpush1.msra.mxu0 0.0
          %1427 = vmatprep.subr.mxu0 0.0
          %1428 = vmatpush1.msra.mxu0 0.0
          %1429 = vmatprep.subr.mxu0 0.0
          %1430 = vmatpush1.msra.mxu0 0.0
          %1431 = vmatprep.subr.mxu0 0.0
          %1432 = vmatpush1.msra.mxu0 0.0
          %1433 = vmatprep.subr.mxu0 0.0
          %1434 = vmatpush1.msra.mxu0 0.0
          %1435 = vmatprep.subr.mxu0 0.0
          %1436 = vmatpush1.msra.mxu0 0.0
          %1437 = vmatprep.subr.mxu0 0.0
          %1438 = vmatpush1.msra.mxu0 0.0
          %1439 = vmatprep.subr.mxu0 0.0
          %1440 = vmatpush1.msra.mxu0 0.0
          %1441 = vmatprep.subr.mxu0 0.0
          %1442 = vmatpush1.msra.mxu0 0.0
          %1443 = vmatprep.subr.mxu0 0.0
          %1444 = vmatpush1.msra.mxu0 0.0
          %1445 = vmatprep.subr.mxu0 0.0
          %1446 = vmatpush1.msra.mxu0 0.0
          %1447 = vmatprep.subr.mxu0 0.0
          %1448 = vmatpush1.msra.mxu0 0.0
          %1449 = vmatprep.subr.mxu0 0.0
          %1450 = vmatpush1.msra.mxu0 0.0
          %1451 = vmatprep.subr.mxu0 0.0
          %1452 = vmatpush1.msra.mxu0 0.0
          %1453 = vmatprep.subr.mxu0 0.0
          %1454 = vmatpush1.msra.mxu0 0.0
          %1455 = vmatprep.subr.mxu0 0.0
          %1456 = vmatpush1.msra.mxu0 0.0
          %1457 = vmatprep.subr.mxu0 0.0
          %1458 = vmatpush1.msra.mxu0 0.0
          %1459 = vmatprep.subr.mxu0 0.0
          %1460 = vmatpush1.msra.mxu0 0.0
          %1461 = vmatprep.subr.mxu0 0.0
          %1462 = vmatpush1.msra.mxu0 0.0
          %1463 = vmatprep.subr.mxu0 0.0
          %1464 = vmatpush1.msra.mxu0 0.0
          %1465 = vmatprep.mubr.f32.mxu0 0.0
          %1466 = vmatmul.mubr.f32.gmra.mrb[0].mxu0 %v1399
          %v1467 = vpop.f32.mrb[0].mxu0
          %v1468 = vadd.f32 0.0, %v1467
          %v1469 = vpop.f32.mrb[0].mxu0
          %1470 = vdwg.mxu0
          %v1471 = vadd.f32 %v1387, %v1468
          %v1472 = vld [vmem:[%s4] sm:$0x1]
          %v1474 = vlaneseq
          %v1475 = vshrl.u32 %v1474, 7
          %v1476 = vsub.s32 0, %v1475
          %v1477 = vrot.slane %v1472, %v1476
          %v1479 = vadd.f32 %v1471, %v1477
          %vm1480 = vcmask 261120
          %1481 = vst.msk [vmem:[%s364] sm:$0xff] %vm1480, %v1479
        $region64: #{tpu_custom_call.1} parent=39 // pred_fallthru
          _
        %s1482 = sand.u32 %s181, 1
        %s1483 = scalar_lea.sflag [#allocation7], %s1482
        %s1484 = sand.u32 %s181, 1
        %s1485 = smul.addr %s1484, 8
        %s1486 = scalar_lea.vmem [#allocation13], %s1485
        // Predicated region
        $region65: #{tpu_custom_call.1} parent=39 // pred_check
          %p1487 = pneg %p191
        $region66: #{tpu_custom_call.1} parent=39 // pred_check_branch
          %1489 = sbr.rel (%p1487) target = $region68
        $region67: #{tpu_custom_call.1} parent=39 // pred_region
          %s1491 = ssub.s32 128, 128
          %1492 = vsyncadd %s1483, %s1491
          %s1493 = sadd.s32 %s32, %s31
          %s1494 = smul.addr %s1493, 128
          %s1495 = scalar_lea.hbm %s5, %s1494
          %s1497 = sshll.u32 %s1486, 4
          %s1498 = int_to_ptr.vmem [resolvable:$true] %s1497
          %1500 = dma.vmem_to_hbm [thread:$0]  %s1498, 128, %s1495, %s1483
        $region68: #{tpu_custom_call.1} parent=39 // pred_fallthru
          _
      $region40: #{tpu_custom_call.1} parent=5 // pred_fallthru
        _
      %p1501 = scmp.le.s32.totalorder 2, %s21
      // Predicated region
      $region69: #{tpu_custom_call.1} parent=5 // pred_check
        %p1502 = pneg %p1501
      $region70: #{tpu_custom_call.1} parent=5 // pred_check_branch
        %1504 = sbr.rel (%p1502) target = $region72
      $region71: #{tpu_custom_call.1} parent=5 // pred_region
        %s1505 = ssub.s32 %s21, 2
        // Predicated region
        $region73: #{tpu_custom_call.1} parent=71 // pred_check
          %p1506 = pneg %p197
        $region74: #{tpu_custom_call.1} parent=71 // pred_check_branch
          %1508 = sbr.rel (%p1506) target = $region76
        $region75: #{tpu_custom_call.1} parent=71 // pred_region
          %s1509 = sand.u32 %s182, 1
          %s1510 = scalar_lea.sflag [#allocation7], %s1509
          %s1511 = sand.u32 %s182, 1
          %s1512 = smul.addr %s1511, 8
          %s1513 = scalar_lea.vmem [#allocation13], %s1512
          %1514 = dma.done %s1510, 128
        $region76: #{tpu_custom_call.1} parent=71 // pred_fallthru
          _
      $region72: #{tpu_custom_call.1} parent=5 // pred_fallthru
        _
    $region6: #{tpu_custom_call.1} parent=1 // loop_footer
      %s25 = sadd.s32 1, %s21
    $region7: #{tpu_custom_call.1} parent=1 // loop_footer_branch
      %20 = sbr.rel target = $region3
    $region8: #{tpu_custom_call.1} parent=1 // loop_exit
      _
    %1515 = vsyncpa [#allocation6], 1
    %s1516 = scalar_lea.sflag [#allocation6], 1
    %1517 = vsyncpa %s1516, 1
    %1518 = vsyncpa [#allocation9], 1
    %s1519 = scalar_lea.sflag [#allocation9], 1
    %1520 = vsyncpa %s1519, 1
    %1521 = vsyncpa [#allocation12], 1
    %1522 = vsyncpa [#allocation7], 1
    %s1523 = scalar_lea.sflag [#allocation7], 1
    %1524 = vsyncpa %s1523, 1

</llo_original>
